<compile_context>
chip_gen: v7x
topology: tpu7x:2x2x1
jax: 0.10.0
libtpu: 0.0.40
codegen_flags: <defaults>
</compile_context>

<pallas_src>
import functools

import jax
import jax.numpy as jnp
import numpy as np
from jax.experimental import pallas as pl
from jax.experimental.pallas import tpu as pltpu


def _round_up(x, m):
    return (x + m - 1) // m * m


# ---------------------------------------------------------------------------
# Pallas kernel
# ---------------------------------------------------------------------------
def _neural_texture_kernel(uv_ref, tex_ref, cx_ref, cy_ref, wm_ref, hm_ref,
                           out_ref):
    """One (batch, pixel-tile) grid step.

    uv_ref  : (1, 2, T)      u in row 0, v in row 1 (lane-dense pixel axis)
    tex_ref : (depth, K_pad) all mip levels concatenated along the texel axis
    cx_ref  : (K_pad, 1)     texel-center x of each row (= x + 0.5), 1e9 for pad rows
    cy_ref  : (K_pad, 1)     texel-center y of each row (= y + 0.5), 1e9 for pad rows
    wm_ref  : (K_pad, 1)     texture width  of the row's mip level
    hm_ref  : (K_pad, 1)     texture height of the row's mip level
    out_ref : (1, depth, T)
    """
    uv = uv_ref[0]                       # (2, T)
    u = uv[0:1, :]                       # (1, T)  grid x -> width
    v = uv[1:2, :]                       # (1, T)  grid y -> height

    # PyTorch: grid = 2*uv - 1 ; ix = ((grid + 1) * W - 1) / 2  ==  uv * W - 0.5.
    # Bilinear weight of texel at integer x for sample ix is the tent
    # max(0, 1 - |ix - x|); rows only exist for in-range texels, which reproduces
    # padding_mode='zeros'.  dx = ix - x = u*W - (x + 0.5) = u*W - cx.
    dx = u * wm_ref[...] - cx_ref[...]            # (K_pad, T)
    dy = v * hm_ref[...] - cy_ref[...]            # (K_pad, T)
    wx = jnp.maximum(1.0 - jnp.abs(dx), 0.0)
    wy = jnp.maximum(1.0 - jnp.abs(dy), 0.0)
    wmat = wx * wy                                # (K_pad, T) bilinear weights

    # Single fused contraction over all mip levels: (depth, K_pad) @ (K_pad, T).
    # Lane-dense (depth, T) result -> unmasked full-width stores.
    out_ref[0] = jnp.dot(tex_ref[...], wmat,
                         preferred_element_type=jnp.float32)


# ---------------------------------------------------------------------------
# Wrapper
# ---------------------------------------------------------------------------
def _pack_row_params(sizes, k_pad):
    """Static per-texel-row metadata for the concatenated texel axis."""
    cx = np.full((k_pad, 1), 1e9, np.float32)   # pad rows -> tent weight 0
    cy = np.full((k_pad, 1), 1e9, np.float32)
    wm = np.zeros((k_pad, 1), np.float32)
    hm = np.zeros((k_pad, 1), np.float32)
    off = 0
    for hm_l, wm_l in sizes:
        hw = hm_l * wm_l
        ys, xs = np.divmod(np.arange(hw), wm_l)
        cx[off:off + hw, 0] = xs.astype(np.float32) + 0.5
        cy[off:off + hw, 0] = ys.astype(np.float32) + 0.5
        wm[off:off + hw, 0] = float(wm_l)
        hm[off:off + hw, 0] = float(hm_l)
        off += hw
    return cx, cy, wm, hm


@functools.partial(jax.jit, static_argnames=("tile_p",))
def neural_texture_forward(uv, mipmaps, tile_p=1024):
    """uv: (N, H, W, 2) f32 in [0, 1]; mipmaps: list of (1, depth, Hm, Wm).

    Returns (N, depth, H, W) f32 — identical to the PyTorch module output layout.
    """
    n, h, w, _ = uv.shape
    depth = int(mipmaps[0].shape[1])
    p = h * w

    sizes = [(int(m.shape[2]), int(m.shape[3])) for m in mipmaps]
    k_tot = sum(hm_l * wm_l for hm_l, wm_l in sizes)
    k_pad = _round_up(max(k_tot, 128), 128)

    # Concatenated textures: (depth, K_pad), row-major over (y, x) per level.
    tex = jnp.concatenate(
        [jnp.asarray(m, jnp.float32)[0].reshape(depth, -1) for m in mipmaps],
        axis=1)
    tex = jnp.pad(tex, ((0, 0), (0, k_pad - k_tot)))

    cx, cy, wm_c, hm_c = _pack_row_params(sizes, k_pad)
    cx, cy, wm_c, hm_c = map(jnp.asarray, (cx, cy, wm_c, hm_c))

    # Lane-dense coordinates: (N, 2, P_pad); tile the pixel axis.
    tile = min(tile_p, _round_up(p, 128))
    p_pad = _round_up(p, tile)
    uvt = jnp.transpose(uv.reshape(n, p, 2).astype(jnp.float32), (0, 2, 1))
    uvt = jnp.pad(uvt, ((0, 0), (0, 0), (0, p_pad - p)))

    out = pl.pallas_call(
        _neural_texture_kernel,
        out_shape=jax.ShapeDtypeStruct((n, depth, p_pad), jnp.float32),
        grid=(n, p_pad // tile),
        in_specs=[
            pl.BlockSpec((1, 2, tile), lambda b, t: (b, 0, t)),
            pl.BlockSpec((depth, k_pad), lambda b, t: (0, 0)),
            pl.BlockSpec((k_pad, 1), lambda b, t: (0, 0)),
            pl.BlockSpec((k_pad, 1), lambda b, t: (0, 0)),
            pl.BlockSpec((k_pad, 1), lambda b, t: (0, 0)),
            pl.BlockSpec((k_pad, 1), lambda b, t: (0, 0)),
        ],
        out_specs=pl.BlockSpec((1, depth, tile), lambda b, t: (b, 0, t)),
        compiler_params=pltpu.CompilerParams(
            dimension_semantics=("parallel", "parallel")),
    )(uvt, tex, cx, cy, wm_c, hm_c)

    # (N, depth, P_pad) -> (N, depth, H, W): slice off pixel padding, reshape only.
    return out[:, :, :p].reshape(n, depth, h, w)


# ---------------------------------------------------------------------------
# Pure-JAX reference (same grid_sample semantics), for a sanity check only.
# ---------------------------------------------------------------------------
def _grid_sample_ref(tex, grid):
    # tex: (1, C, Hm, Wm); grid: (N, H, W, 2)
    _, c, hm, wm = tex.shape
    gx = grid[..., 0]
    gy = grid[..., 1]
    ix = ((gx + 1.0) * wm - 1.0) * 0.5
    iy = ((gy + 1.0) * hm - 1.0) * 0.5
    x0 = jnp.floor(ix).astype(jnp.int32)
    y0 = jnp.floor(iy).astype(jnp.int32)
    wx1 = ix - x0
    wy1 = iy - y0

    def corner(xc, yc, wt):
        valid = (xc >= 0) & (xc < wm) & (yc >= 0) & (yc < hm)
        xcc = jnp.clip(xc, 0, wm - 1)
        ycc = jnp.clip(yc, 0, hm - 1)
        vals = tex[0][:, ycc, xcc]                    # (C, N, H, W)
        return vals * (wt * valid)[None]

    out = (corner(x0, y0, (1 - wx1) * (1 - wy1))
           + corner(x0 + 1, y0, wx1 * (1 - wy1))
           + corner(x0, y0 + 1, (1 - wx1) * wy1)
           + corner(x0 + 1, y0 + 1, wx1 * wy1))
    return out.transpose(1, 0, 2, 3)                  # (N, C, H, W)


def _reference(uv, mipmaps):
    grid = 2.0 * uv - 1.0
    out = 0.0
    for m in mipmaps:
        out = out + _grid_sample_ref(m, grid)
    return out


# ---------------------------------------------------------------------------
if __name__ == "__main__":
    size = 16
    depth = 4
    n, h, w = 2, 16, 16

    keys = jax.random.split(jax.random.PRNGKey(0), 5)
    # Deterministic "uniform_(-1, 1)" mipmap parameters.
    mipmaps = [
        jax.random.uniform(keys[l], (1, depth, size // 2 ** l, size // 2 ** l),
                           jnp.float32, minval=-1.0, maxval=1.0)
        for l in range(4)
    ]
    # Input uv coordinates in [0, 1], shape (N, H, W, 2).
    uv = jax.random.uniform(keys[4], (n, h, w, 2), jnp.float32)

    out = jax.block_until_ready(neural_texture_forward(uv, mipmaps))

    ref = _reference(uv, mipmaps)
    assert out.shape == (n, depth, h, w), out.shape
    err = float(np.max(np.abs(np.asarray(out) - np.asarray(ref))))
    # Default-precision MXU rounds operands to bf16 (accumulate in f32); with
    # sum(weights)=1 per level and |tex|<=1 the error bound is ~1.6e-2.
    assert err < 2e-2, err
    print("KERNEL_OK")
</pallas_src>

<mosaic_0001>
module attributes {stable_mosaic.version = 11 : i64} {
  func.func @_neural_texture_kernel(%arg0: i32, %arg1: i32, %arg2: memref<1x2x256xf32, #tpu.memory_space<vmem>>, %arg3: memref<4x384xf32, #tpu.memory_space<vmem>>, %arg4: memref<384x1xf32, #tpu.memory_space<vmem>>, %arg5: memref<384x1xf32, #tpu.memory_space<vmem>>, %arg6: memref<384x1xf32, #tpu.memory_space<vmem>>, %arg7: memref<384x1xf32, #tpu.memory_space<vmem>>, %arg8: memref<1x4x256xf32, #tpu.memory_space<vmem>>) attributes {dimension_semantics = [#tpu.dimension_semantics<parallel>, #tpu.dimension_semantics<parallel>], iteration_bounds = array<i64: 2, 1>, scalar_prefetch = 0 : i64, scratch_operands = 0 : i64, tpu.core_type = #tpu.core_type<tc>, window_params = [{transform_indices = @transform_0, window_bounds = array<i64: 1, 2, 256>}, {pipeline_mode = #tpu.pipeline_mode<synchronous>, transform_indices = @transform_1, window_bounds = array<i64: 4, 384>}, {pipeline_mode = #tpu.pipeline_mode<synchronous>, transform_indices = @transform_2, window_bounds = array<i64: 384, 1>}, {pipeline_mode = #tpu.pipeline_mode<synchronous>, transform_indices = @transform_3, window_bounds = array<i64: 384, 1>}, {pipeline_mode = #tpu.pipeline_mode<synchronous>, transform_indices = @transform_4, window_bounds = array<i64: 384, 1>}, {pipeline_mode = #tpu.pipeline_mode<synchronous>, transform_indices = @transform_5, window_bounds = array<i64: 384, 1>}, {transform_indices = @transform_6, window_bounds = array<i64: 1, 4, 256>}]} {
    %c0 = arith.constant 0 : index
    %c0_0 = arith.constant 0 : index
    %c0_1 = arith.constant 0 : index
    %0 = vector.load %arg2[%c0, %c0_0, %c0_1] : memref<1x2x256xf32, #tpu.memory_space<vmem>>, vector<1x2x256xf32>
    %1 = vector.shape_cast %0 : vector<1x2x256xf32> to vector<2x256xf32>
    %2 = vector.extract_strided_slice %1 {offsets = [0, 0], sizes = [1, 256], strides = [1, 1]} : vector<2x256xf32> to vector<1x256xf32>
    %3 = vector.extract_strided_slice %1 {offsets = [1, 0], sizes = [1, 256], strides = [1, 1]} : vector<2x256xf32> to vector<1x256xf32>
    %c0_2 = arith.constant 0 : index
    %c0_3 = arith.constant 0 : index
    %4 = vector.load %arg6[%c0_2, %c0_3] : memref<384x1xf32, #tpu.memory_space<vmem>>, vector<384x1xf32>
    %5 = vector.broadcast %2 : vector<1x256xf32> to vector<384x256xf32>
    %6 = vector.broadcast %4 : vector<384x1xf32> to vector<384x256xf32>
    %7 = arith.mulf %5, %6 : vector<384x256xf32>
    %c0_4 = arith.constant 0 : index
    %c0_5 = arith.constant 0 : index
    %8 = vector.load %arg4[%c0_4, %c0_5] : memref<384x1xf32, #tpu.memory_space<vmem>>, vector<384x1xf32>
    %9 = vector.broadcast %8 : vector<384x1xf32> to vector<384x256xf32>
    %10 = arith.subf %7, %9 : vector<384x256xf32>
    %c0_6 = arith.constant 0 : index
    %c0_7 = arith.constant 0 : index
    %11 = vector.load %arg7[%c0_6, %c0_7] : memref<384x1xf32, #tpu.memory_space<vmem>>, vector<384x1xf32>
    %12 = vector.broadcast %3 : vector<1x256xf32> to vector<384x256xf32>
    %13 = vector.broadcast %11 : vector<384x1xf32> to vector<384x256xf32>
    %14 = arith.mulf %12, %13 : vector<384x256xf32>
    %c0_8 = arith.constant 0 : index
    %c0_9 = arith.constant 0 : index
    %15 = vector.load %arg5[%c0_8, %c0_9] : memref<384x1xf32, #tpu.memory_space<vmem>>, vector<384x1xf32>
    %16 = vector.broadcast %15 : vector<384x1xf32> to vector<384x256xf32>
    %17 = arith.subf %14, %16 : vector<384x256xf32>
    %18 = math.absf %10 : vector<384x256xf32>
    %cst = arith.constant 1.000000e+00 : f32
    %19 = vector.broadcast %cst : f32 to vector<384x256xf32>
    %20 = arith.subf %19, %18 : vector<384x256xf32>
    %cst_10 = arith.constant 0.000000e+00 : f32
    %21 = vector.broadcast %cst_10 : f32 to vector<384x256xf32>
    %22 = arith.maximumf %20, %21 : vector<384x256xf32>
    %23 = math.absf %17 : vector<384x256xf32>
    %cst_11 = arith.constant 1.000000e+00 : f32
    %24 = vector.broadcast %cst_11 : f32 to vector<384x256xf32>
    %25 = arith.subf %24, %23 : vector<384x256xf32>
    %cst_12 = arith.constant 0.000000e+00 : f32
    %26 = vector.broadcast %cst_12 : f32 to vector<384x256xf32>
    %27 = arith.maximumf %25, %26 : vector<384x256xf32>
    %28 = arith.mulf %22, %27 : vector<384x256xf32>
    %c0_13 = arith.constant 0 : index
    %c0_14 = arith.constant 0 : index
    %29 = vector.load %arg3[%c0_13, %c0_14] : memref<4x384xf32, #tpu.memory_space<vmem>>, vector<4x384xf32>
    %cst_15 = arith.constant dense<0.000000e+00> : vector<4x256xf32>
    %30 = tpu.matmul %29, %28, %cst_15 {dimension_numbers = #tpu.dot_dimension_numbers<[1], [0], [0], [1], [0, 0, 1, 1], [], []>} : vector<4x384xf32>, vector<384x256xf32>, vector<4x256xf32> -> vector<4x256xf32>
    %c0_16 = arith.constant 0 : index
    %c0_17 = arith.constant 0 : index
    %c0_18 = arith.constant 0 : index
    %31 = vector.load %arg8[%c0_16, %c0_17, %c0_18] : memref<1x4x256xf32, #tpu.memory_space<vmem>>, vector<1x4x256xf32>
    %32 = vector.shape_cast %31 : vector<1x4x256xf32> to vector<4x256xf32>
    %33 = vector.shape_cast %30 : vector<4x256xf32> to vector<1x4x256xf32>
    tpu.vector_store %arg8[%c0_16, %c0_17, %c0_18], %33 {strides = array<i32>} : memref<1x4x256xf32, #tpu.memory_space<vmem>>, vector<1x4x256xf32>,
    return
  }
  func.func @transform_0(%arg0: i32, %arg1: i32) -> (i32, i32, i32) {
    %c0_i32 = arith.constant 0 : i32
    %c0_i32_0 = arith.constant 0 : i32
    return %arg0, %c0_i32, %arg1 : i32, i32, i32
  }
  func.func @transform_1(%arg0: i32, %arg1: i32) -> (i32, i32) {
    %c0_i32 = arith.constant 0 : i32
    %c0_i32_0 = arith.constant 0 : i32
    %c0_i32_1 = arith.constant 0 : i32
    return %c0_i32, %c0_i32_0 : i32, i32
  }
  func.func @transform_2(%arg0: i32, %arg1: i32) -> (i32, i32) {
    %c0_i32 = arith.constant 0 : i32
    %c0_i32_0 = arith.constant 0 : i32
    %c0_i32_1 = arith.constant 0 : i32
    return %c0_i32, %c0_i32_0 : i32, i32
  }
  func.func @transform_3(%arg0: i32, %arg1: i32) -> (i32, i32) {
    %c0_i32 = arith.constant 0 : i32
    %c0_i32_0 = arith.constant 0 : i32
    %c0_i32_1 = arith.constant 0 : i32
    return %c0_i32, %c0_i32_0 : i32, i32
  }
  func.func @transform_4(%arg0: i32, %arg1: i32) -> (i32, i32) {
    %c0_i32 = arith.constant 0 : i32
    %c0_i32_0 = arith.constant 0 : i32
    %c0_i32_1 = arith.constant 0 : i32
    return %c0_i32, %c0_i32_0 : i32, i32
  }
  func.func @transform_5(%arg0: i32, %arg1: i32) -> (i32, i32) {
    %c0_i32 = arith.constant 0 : i32
    %c0_i32_0 = arith.constant 0 : i32
    %c0_i32_1 = arith.constant 0 : i32
    return %c0_i32, %c0_i32_0 : i32, i32
  }
  func.func @transform_6(%arg0: i32, %arg1: i32) -> (i32, i32, i32) {
    %c0_i32 = arith.constant 0 : i32
    %c0_i32_0 = arith.constant 0 : i32
    return %arg0, %c0_i32, %arg1 : i32, i32, i32
  }
}

</mosaic_0001>

<llo_original>
// kernel: squeeze.4
$region0: #{squeeze.4}
  %s0 = inlined_call_operand.hbm [shape: f32[1,4,16,16], index: 0, kind: input, shape index: {}]
  %s1 = inlined_call_operand.vmem [shape: f32[4,256], index: 1, kind: output, shape index: {}]
  $region1: #{squeeze.4} parent=0
    #allocation0 [shape = 'u8[32768]{0}', space=vmem, size = 0x8000, scoped, tag = 'operand span for operand 0']
    #allocation1 [shape = 's32[1]{0}', space=sflag, size = 0x4, scoped, tag = 'scoped memory for squeeze.4']
    #allocation2 [shape = 'u8[8192]{0}', space=vmem, size = 0x2000, scoped, tag = 'scoped mem for output reshape']
    %2 = vsyncpa [#allocation1], 0
    %s4 = ssub.s32 1024, 1024
    %5 = vsyncadd [#allocation1], %s4
    %s7 = sshll.u32 [#allocation0], 4
    %s8 = int_to_ptr.vmem [resolvable:$true] %s7
    %10 = dma.hbm_to_vmem [thread:$0]  %s0, 1024, %s8, [#allocation1]
    %11 = dma.done [#allocation1], 1024
    %v12 = vld [vmem:[#allocation0] ss:$8 sm:$0xf]
    %v13 = vld [vmem:[#allocation0] ss:$8 sm:$0xf0]
    %vm14 = vcmask 1047556
    %v15 = vsel %vm14, %v13, %v12
    %vm16 = vcmask 130048
    %17 = vst.msk [vmem:[#allocation2] ss:$8 sm:$0x3] %vm16, %v15
    %s18 = scalar_lea.vmem [#allocation2], 4294967281
    %19 = vst.msk [vmem:[%s18] ss:$8 sm:$0xc] %vm16, %v15
    %s20 = scalar_lea.vmem [#allocation2], 4294967266
    %21 = vst.msk [vmem:[%s20] ss:$8 sm:$0x30] %vm16, %v15
    %s22 = scalar_lea.vmem [#allocation2], 4294967251
    %23 = vst.msk [vmem:[%s22] ss:$8 sm:$0xc0] %vm16, %v15
    %s24 = scalar_lea.vmem [#allocation0], 7
    %s25 = smov 3
    %v26 = vld [vmem:[%s24] ss:$16 sm:%s25]
    %s27 = scalar_lea.vmem [#allocation0], 7
    %s28 = smov 12
    %v29 = vld [vmem:[%s27] ss:$16 sm:%s28]
    %vm30 = vcmask 1043458
    %v31 = vsel %vm30, %v29, %v26
    %s32 = scalar_lea.vmem [#allocation0], 4294967247
    %s33 = smov 48
    %v34 = vld [vmem:[%s32] ss:$16 sm:%s33]
    %vm35 = vcmask 1045508
    %v36 = vsel %vm35, %v34, %v31
    %s37 = scalar_lea.vmem [#allocation0], 4294967247
    %s38 = smov 192
    %v39 = vld [vmem:[%s37] ss:$16 sm:%s38]
    %vm40 = vcmask 1047558
    %v41 = vsel %vm40, %v39, %v36
    %42 = vrot.lane.b32.xlu0 %v41, 112
    %v43 = vpop.permute.xlu0 %42
    %vm44 = vcmask 1048448
    %45 = vst.msk [vmem:[#allocation2] sm:$0xf] %vm44, %v43
    %s46 = scalar_lea.vmem [#allocation2], 4
    %47 = vst.msk [vmem:[%s46] sm:$0xf0] %vm44, %v43
    %s48 = scalar_lea.vmem [#allocation0], 6
    %s49 = smov 3
    %v50 = vld [vmem:[%s48] ss:$16 sm:%s49]
    %s51 = scalar_lea.vmem [#allocation0], 6
    %s52 = smov 12
    %v53 = vld [vmem:[%s51] ss:$16 sm:%s52]
    %vm54 = vcmask 1043458
    %v55 = vsel %vm54, %v53, %v50
    %s56 = scalar_lea.vmem [#allocation0], 4294967246
    %s57 = smov 48
    %v58 = vld [vmem:[%s56] ss:$16 sm:%s57]
    %vm59 = vcmask 1045508
    %v60 = vsel %vm59, %v58, %v55
    %s61 = scalar_lea.vmem [#allocation0], 4294967246
    %s62 = smov 192
    %v63 = vld [vmem:[%s61] ss:$16 sm:%s62]
    %vm64 = vcmask 1047558
    %v65 = vsel %vm64, %v63, %v60
    %66 = vrot.lane.b32.xlu0 %v65, 96
    %v67 = vpop.permute.xlu0 %66
    %vm68 = vcmask 917248
    %69 = vst.msk [vmem:[#allocation2] sm:$0xf] %vm68, %v67
    %s70 = scalar_lea.vmem [#allocation2], 4
    %71 = vst.msk [vmem:[%s70] sm:$0xf0] %vm68, %v67
    %s72 = scalar_lea.vmem [#allocation0], 5
    %s73 = smov 3
    %v74 = vld [vmem:[%s72] ss:$16 sm:%s73]
    %s75 = scalar_lea.vmem [#allocation0], 5
    %s76 = smov 12
    %v77 = vld [vmem:[%s75] ss:$16 sm:%s76]
    %vm78 = vcmask 1043458
    %v79 = vsel %vm78, %v77, %v74
    %s80 = scalar_lea.vmem [#allocation0], 4294967245
    %s81 = smov 48
    %v82 = vld [vmem:[%s80] ss:$16 sm:%s81]
    %vm83 = vcmask 1045508
    %v84 = vsel %vm83, %v82, %v79
    %s85 = scalar_lea.vmem [#allocation0], 4294967245
    %s86 = smov 192
    %v87 = vld [vmem:[%s85] ss:$16 sm:%s86]
    %vm88 = vcmask 1047558
    %v89 = vsel %vm88, %v87, %v84
    %90 = vrot.lane.b32.xlu0 %v89, 80
    %v91 = vpop.permute.xlu0 %90
    %vm92 = vcmask 786048
    %93 = vst.msk [vmem:[#allocation2] sm:$0xf] %vm92, %v91
    %s94 = scalar_lea.vmem [#allocation2], 4
    %95 = vst.msk [vmem:[%s94] sm:$0xf0] %vm92, %v91
    %s96 = scalar_lea.vmem [#allocation0], 4
    %s97 = smov 3
    %v98 = vld [vmem:[%s96] ss:$16 sm:%s97]
    %s99 = scalar_lea.vmem [#allocation0], 4
    %s100 = smov 12
    %v101 = vld [vmem:[%s99] ss:$16 sm:%s100]
    %vm102 = vcmask 1043458
    %v103 = vsel %vm102, %v101, %v98
    %s104 = scalar_lea.vmem [#allocation0], 4294967244
    %s105 = smov 48
    %v106 = vld [vmem:[%s104] ss:$16 sm:%s105]
    %vm107 = vcmask 1045508
    %v108 = vsel %vm107, %v106, %v103
    %s109 = scalar_lea.vmem [#allocation0], 4294967244
    %s110 = smov 192
    %v111 = vld [vmem:[%s109] ss:$16 sm:%s110]
    %vm112 = vcmask 1047558
    %v113 = vsel %vm112, %v111, %v108
    %114 = vrot.lane.b32.xlu0 %v113, 64
    %v115 = vpop.permute.xlu0 %114
    %vm116 = vcmask 654848
    %117 = vst.msk [vmem:[#allocation2] sm:$0xf] %vm116, %v115
    %s118 = scalar_lea.vmem [#allocation2], 4
    %119 = vst.msk [vmem:[%s118] sm:$0xf0] %vm116, %v115
    %s120 = scalar_lea.vmem [#allocation0], 3
    %s121 = smov 3
    %v122 = vld [vmem:[%s120] ss:$16 sm:%s121]
    %s123 = scalar_lea.vmem [#allocation0], 3
    %s124 = smov 12
    %v125 = vld [vmem:[%s123] ss:$16 sm:%s124]
    %vm126 = vcmask 1043458
    %v127 = vsel %vm126, %v125, %v122
    %s128 = scalar_lea.vmem [#allocation0], 4294967243
    %s129 = smov 48
    %v130 = vld [vmem:[%s128] ss:$16 sm:%s129]
    %vm131 = vcmask 1045508
    %v132 = vsel %vm131, %v130, %v127
    %s133 = scalar_lea.vmem [#allocation0], 4294967243
    %s134 = smov 192
    %v135 = vld [vmem:[%s133] ss:$16 sm:%s134]
    %vm136 = vcmask 1047558
    %v137 = vsel %vm136, %v135, %v132
    %138 = vrot.lane.b32.xlu0 %v137, 48
    %v139 = vpop.permute.xlu0 %138
    %vm140 = vcmask 523648
    %141 = vst.msk [vmem:[#allocation2] sm:$0xf] %vm140, %v139
    %s142 = scalar_lea.vmem [#allocation2], 4
    %143 = vst.msk [vmem:[%s142] sm:$0xf0] %vm140, %v139
    %s144 = scalar_lea.vmem [#allocation0], 2
    %s145 = smov 3
    %v146 = vld [vmem:[%s144] ss:$16 sm:%s145]
    %s147 = scalar_lea.vmem [#allocation0], 2
    %s148 = smov 12
    %v149 = vld [vmem:[%s147] ss:$16 sm:%s148]
    %vm150 = vcmask 1043458
    %v151 = vsel %vm150, %v149, %v146
    %s152 = scalar_lea.vmem [#allocation0], 4294967242
    %s153 = smov 48
    %v154 = vld [vmem:[%s152] ss:$16 sm:%s153]
    %vm155 = vcmask 1045508
    %v156 = vsel %vm155, %v154, %v151
    %s157 = scalar_lea.vmem [#allocation0], 4294967242
    %s158 = smov 192
    %v159 = vld [vmem:[%s157] ss:$16 sm:%s158]
    %vm160 = vcmask 1047558
    %v161 = vsel %vm160, %v159, %v156
    %162 = vrot.lane.b32.xlu0 %v161, 32
    %v163 = vpop.permute.xlu0 %162
    %vm164 = vcmask 392448
    %165 = vst.msk [vmem:[#allocation2] sm:$0xf] %vm164, %v163
    %s166 = scalar_lea.vmem [#allocation2], 4
    %167 = vst.msk [vmem:[%s166] sm:$0xf0] %vm164, %v163
    %s168 = scalar_lea.vmem [#allocation0], 1
    %s169 = smov 3
    %v170 = vld [vmem:[%s168] ss:$16 sm:%s169]
    %s171 = scalar_lea.vmem [#allocation0], 1
    %s172 = smov 12
    %v173 = vld [vmem:[%s171] ss:$16 sm:%s172]
    %vm174 = vcmask 1043458
    %v175 = vsel %vm174, %v173, %v170
    %s176 = scalar_lea.vmem [#allocation0], 4294967241
    %s177 = smov 48
    %v178 = vld [vmem:[%s176] ss:$16 sm:%s177]
    %vm179 = vcmask 1045508
    %v180 = vsel %vm179, %v178, %v175
    %s181 = scalar_lea.vmem [#allocation0], 4294967241
    %s182 = smov 192
    %v183 = vld [vmem:[%s181] ss:$16 sm:%s182]
    %vm184 = vcmask 1047558
    %v185 = vsel %vm184, %v183, %v180
    %186 = vrot.lane.b32.xlu0 %v185, 16
    %v187 = vpop.permute.xlu0 %186
    %vm188 = vcmask 261248
    %189 = vst.msk [vmem:[#allocation2] sm:$0xf] %vm188, %v187
    %s190 = scalar_lea.vmem [#allocation2], 4
    %191 = vst.msk [vmem:[%s190] sm:$0xf0] %vm188, %v187
    %s193 = sshllo.u32 0, 4
    %v195 = vld [vmem:[#allocation2] sm:%s193]
    %s196 = sshllo.u32 0, 4
    %197 = vst [vmem:[%s1] sm:%s196] %v195
    %s198 = scalar_lea.vmem [#allocation2], 8
    %v199 = vld [vmem:[%s198] sm:%s193]
    %s200 = sshllo.u32 0, 4
    %s201 = scalar_lea.vmem %s1, 4
    %202 = vst [vmem:[%s201] sm:%s200] %v199
    %203 = vsyncpa [#allocation1], 1

// kernel: squeeze.6
$region0: #{squeeze.6}
  %s0 = inlined_call_operand.hbm [shape: f32[1,4,4,4], index: 0, kind: input, shape index: {}]
  %s1 = inlined_call_operand.vmem [shape: f32[4,16], index: 1, kind: output, shape index: {}]
  $region1: #{squeeze.6} parent=0
    #allocation0 [shape = 'u8[8192]{0}', space=vmem, size = 0x2000, scoped, tag = 'operand span for operand 0']
    #allocation1 [shape = 's32[1]{0}', space=sflag, size = 0x4, scoped, tag = 'scoped memory for squeeze.6']
    #allocation2 [shape = 'u8[4096]{0}', space=vmem, size = 0x1000, scoped, tag = 'scoped mem for output reshape']
    #allocation3 [shape = 'u8[16384]{0}', space=vmem, size = 0x4000, scoped, tag = 'scoped mem for input reshape']
    %2 = vsyncpa [#allocation1], 0
    %s4 = ssub.s32 256, 256
    %5 = vsyncadd [#allocation1], %s4
    %s7 = sshll.u32 [#allocation0], 4
    %s8 = int_to_ptr.vmem [resolvable:$true] %s7
    %10 = dma.hbm_to_vmem [thread:$0]  %s0, 256, %s8, [#allocation1]
    %11 = dma.done [#allocation1], 256
    %s13 = sshllo.u32 0, 4
    %s14 = smul.addr 4, 3
    %s15 = scalar_lea.vmem [#allocation0], %s14
    %v16 = vld [vmem:[%s15] sm:%s13]
    %s17 = scalar_lea.vmem [#allocation3], 24
    %18 = vst [vmem:[%s17] sm:%s13] %v16
    %s19 = smul.addr 4, 2
    %s20 = scalar_lea.vmem [#allocation0], %s19
    %v21 = vld [vmem:[%s20] sm:%s13]
    %s22 = scalar_lea.vmem [#allocation3], 16
    %23 = vst [vmem:[%s22] sm:%s13] %v21
    %s24 = scalar_lea.vmem [#allocation0], 4
    %v25 = vld [vmem:[%s24] sm:%s13]
    %s26 = scalar_lea.vmem [#allocation3], 8
    %27 = vst [vmem:[%s26] sm:%s13] %v25
    %v28 = vld [vmem:[#allocation0] sm:%s13]
    %29 = vst [vmem:[#allocation3] sm:%s13] %v28
    %v30 = vld [vmem:[#allocation3] ss:$8 sm:$0xf]
    %vm31 = vcmask 31744
    %32 = vst.msk [vmem:[#allocation2] sm:$0xf] %vm31, %v30
    %s33 = scalar_lea.vmem [#allocation3], 3
    %v34 = vld [vmem:[%s33] ss:$8 sm:$0xf]
    %35 = vrot.lane.b32.xlu0 %v34, 12
    %v36 = vpop.permute.xlu0 %35
    %vm37 = vcmask 130144
    %38 = vst.msk [vmem:[#allocation2] sm:$0xf] %vm37, %v36
    %s39 = scalar_lea.vmem [#allocation3], 2
    %v40 = vld [vmem:[%s39] ss:$8 sm:$0xf]
    %41 = vrot.lane.b32.xlu0 %v40, 8
    %v42 = vpop.permute.xlu0 %41
    %vm43 = vcmask 97344
    %44 = vst.msk [vmem:[#allocation2] sm:$0xf] %vm43, %v42
    %s45 = scalar_lea.vmem [#allocation3], 1
    %v46 = vld [vmem:[%s45] ss:$8 sm:$0xf]
    %47 = vrot.lane.b32.xlu0 %v46, 4
    %v48 = vpop.permute.xlu0 %47
    %vm49 = vcmask 64544
    %50 = vst.msk [vmem:[#allocation2] sm:$0xf] %vm49, %v48
    %s52 = sshllo.u32 0, 4
    %v54 = vld [vmem:[#allocation2] sm:%s52]
    %s55 = sshllo.u32 0, 4
    %56 = vst [vmem:[%s1] sm:%s55] %v54
    %57 = vsyncpa [#allocation1], 1

// kernel: squeeze.5
$region0: #{squeeze.5}
  %s0 = inlined_call_operand.hbm [shape: f32[1,4,8,8], index: 0, kind: input, shape index: {}]
  %s1 = inlined_call_operand.vmem [shape: f32[4,64], index: 1, kind: output, shape index: {}]
  $region1: #{squeeze.5} parent=0
    #allocation0 [shape = 'u8[16384]{0}', space=vmem, size = 0x4000, scoped, tag = 'operand span for operand 0']
    #allocation1 [shape = 's32[1]{0}', space=sflag, size = 0x4, scoped, tag = 'scoped memory for squeeze.5']
    #allocation2 [shape = 'u8[4096]{0}', space=vmem, size = 0x1000, scoped, tag = 'scoped mem for output reshape']
    %2 = vsyncpa [#allocation1], 0
    %s4 = ssub.s32 512, 512
    %5 = vsyncadd [#allocation1], %s4
    %s7 = sshll.u32 [#allocation0], 4
    %s8 = int_to_ptr.vmem [resolvable:$true] %s7
    %10 = dma.hbm_to_vmem [thread:$0]  %s0, 512, %s8, [#allocation1]
    %11 = dma.done [#allocation1], 512
    %v12 = vld [vmem:[#allocation0] ss:$8 sm:$0xf]
    %vm13 = vcmask 64512
    %14 = vst.msk [vmem:[#allocation2] sm:$0xf] %vm13, %v12
    %s15 = scalar_lea.vmem [#allocation0], 7
    %v16 = vld [vmem:[%s15] ss:$8 sm:$0xf]
    %17 = vrot.lane.b32.xlu0 %v16, 56
    %v18 = vpop.permute.xlu0 %17
    %vm19 = vcmask 523712
    %20 = vst.msk [vmem:[#allocation2] sm:$0xf] %vm19, %v18
    %s21 = scalar_lea.vmem [#allocation0], 6
    %v22 = vld [vmem:[%s21] ss:$8 sm:$0xf]
    %23 = vrot.lane.b32.xlu0 %v22, 48
    %v24 = vpop.permute.xlu0 %23
    %vm25 = vcmask 458112
    %26 = vst.msk [vmem:[#allocation2] sm:$0xf] %vm25, %v24
    %s27 = scalar_lea.vmem [#allocation0], 5
    %v28 = vld [vmem:[%s27] ss:$8 sm:$0xf]
    %29 = vrot.lane.b32.xlu0 %v28, 40
    %v30 = vpop.permute.xlu0 %29
    %vm31 = vcmask 392512
    %32 = vst.msk [vmem:[#allocation2] sm:$0xf] %vm31, %v30
    %s33 = scalar_lea.vmem [#allocation0], 4
    %v34 = vld [vmem:[%s33] ss:$8 sm:$0xf]
    %35 = vrot.lane.b32.xlu0 %v34, 32
    %v36 = vpop.permute.xlu0 %35
    %vm37 = vcmask 326912
    %38 = vst.msk [vmem:[#allocation2] sm:$0xf] %vm37, %v36
    %s39 = scalar_lea.vmem [#allocation0], 3
    %v40 = vld [vmem:[%s39] ss:$8 sm:$0xf]
    %41 = vrot.lane.b32.xlu0 %v40, 24
    %v42 = vpop.permute.xlu0 %41
    %vm43 = vcmask 261312
    %44 = vst.msk [vmem:[#allocation2] sm:$0xf] %vm43, %v42
    %s45 = scalar_lea.vmem [#allocation0], 2
    %v46 = vld [vmem:[%s45] ss:$8 sm:$0xf]
    %47 = vrot.lane.b32.xlu0 %v46, 16
    %v48 = vpop.permute.xlu0 %47
    %vm49 = vcmask 195712
    %50 = vst.msk [vmem:[#allocation2] sm:$0xf] %vm49, %v48
    %s51 = scalar_lea.vmem [#allocation0], 1
    %v52 = vld [vmem:[%s51] ss:$8 sm:$0xf]
    %53 = vrot.lane.b32.xlu0 %v52, 8
    %v54 = vpop.permute.xlu0 %53
    %vm55 = vcmask 130112
    %56 = vst.msk [vmem:[#allocation2] sm:$0xf] %vm55, %v54
    %s58 = sshllo.u32 0, 4
    %v60 = vld [vmem:[#allocation2] sm:%s58]
    %s61 = sshllo.u32 0, 4
    %62 = vst [vmem:[%s1] sm:%s61] %v60
    %63 = vsyncpa [#allocation1], 1

// kernel: neural_texture_forward.1
$region0: #{neural_texture_forward.1}
  #allocation0 [shape = 'u32[]', space=smem, size = 0x4, offset = 0x4, fixed_abs, tag = 'smem constant byte address 0x4 - core index']
  #allocation1 [shape = 'u32[144,128]{1,0:T(1,128)}', space=vmem, size = 0x12000, scoped, tag = 'internal scratch']
  %s0 = inlined_call_operand.vmem [shape: f32[2,2,256], index: 0, kind: input, shape index: {}]
  %s1 = inlined_call_operand.vmem [shape: f32[4,384], index: 1, kind: input, shape index: {}]
  %s2 = inlined_call_operand.hbm [shape: f32[384,1], index: 2, kind: input, shape index: {}]
  %s3 = inlined_call_operand.hbm [shape: f32[384,1], index: 3, kind: input, shape index: {}]
  %s4 = inlined_call_operand.vmem [shape: f32[384,1], index: 4, kind: input, shape index: {}, may-alias: {4,5}]
  %s5 = inlined_call_operand.vmem [shape: f32[384,1], index: 5, kind: input, shape index: {}, may-alias: {4,5}]
  %s6 = inlined_call_operand.vmem [shape: f32[2,4,256], index: 6, kind: output, shape index: {}]
  %s7 = sld [smem:[#allocation0]]
  $region65: #{neural_texture_forward.1} parent=0
    _
  %s9 = ssub.s32 1, %s7
  %s10 = scalar_select 0, %s9, %s7
  $region1: #{neural_texture_forward.1} parent=0
    #allocation2 [shape = 'u8[196608]{0}', space=vmem, size = 0x30000, scoped, tag = 'input window, operand 2, single buffered']
    #allocation3 [shape = 's32[2]{0}', space=sflag, size = 0x8, scoped, tag = 'scoped memory for neural_texture_forward.1']
    #allocation4 [shape = 'u8[196608]{0}', space=vmem, size = 0x30000, scoped, tag = 'input window, operand 3, single buffered']
    #allocation5 [shape = 's32[1]{0}', space=sflag, size = 0x4, scoped, tag = 'scoped memory for neural_texture_forward.1']
    %11 = vsyncpa [#allocation3], 0
    %12 = vsyncpa [#allocation5], 0
    loop: start=0, step=1, limit=4
    $region2: #{neural_texture_forward.1} parent=1 // loop_pre_header
      _
    $region3: #{neural_texture_forward.1} parent=1 // loop_header
      %s14 = sphi 0, %s18
      %p15 = scmp.ge.s32.totalorder %s14, 4
      %s21 = sphi 0, %s33
      %s22 = sphi 0, %s29
      %s23 = sphi 0, %s21
      %s24 = sphi 0, %s22
      %s25 = sphi 0, %s23
      %s26 = sphi 0, %s24
      %s38 = sphi 0, %s40
      %s41 = sphi 0, %s38
      %s42 = sphi 0, %s41
      %s58 = sphi 0, %s42
      %s62 = sphi 0, %s62
      %s64 = sphi 0, %s62
      %s65 = sphi 0, %s64
      %s79 = sphi 0, %s65
      %s83 = sphi 0, %s83
      %s85 = sphi 0, %s83
      %s86 = sphi 0, %s85
      %s100 = sphi 0, %s86
      %s104 = sphi 0, %s104
      %s106 = sphi 0, %s104
      %s107 = sphi 0, %s106
      %s121 = sphi 0, %s107
      %s125 = sphi 0, %s125
      %s127 = sphi 0, %s125
      %s128 = sphi 0, %s127
      %s142 = sphi 0, %s128
      %s146 = sphi 0, %s146
      %s148 = sphi 0, %s146
      %s149 = sphi 0, %s148
      %s163 = sphi 0, %s149
      %s171 = sphi 0, %s173
      %s174 = sphi 0, %s171
      %s175 = sphi 0, %s174
      %s191 = sphi 0, %s175
    $region4: #{neural_texture_forward.1} parent=1 // loop_header_branch
      %17 = sbr.rel (%p15) target = $region8
    $region5: #{neural_texture_forward.1} parent=1 // loop_body
      %s19 = ssub.s32 %s14, 1
      %s20 = ssub.s32 %s14, 2
      %s27 = sadd.s32 1, %s22
      %p28 = scmp.ge.s32.totalorder %s27, 1
      %s29 = scalar_select %p28, 0, %s27
      %s30 = sadd.s32 1, %s21
      %s31 = scalar_select %p28, %s30, %s21
      %p32 = scmp.ge.s32.totalorder %s31, 2
      %s33 = scalar_select %p32, 0, %s31
      %s34 = ssub.s32 %s21, %s33
      %s35 = ssub.s32 %s22, %s29
      %s36 = sor.u32 %s34, %s35
      %p37 = scmp.eq.s32.totalorder %s36, 0
      %s39 = sadd.s32 %s38, 1
      %s40 = scalar_select %p37, %s38, %s39
      %p43 = pneg %p37
      %p44 = scmp.eq.s32.totalorder %s14, 1
      %p45 = por %p43, %p44
      %p46 = scmp.ne.s32.totalorder %s38, %s41
      %p47 = scmp.eq.s32.totalorder %s14, 0
      %p48 = por %p46, %p47
      %p49 = scmp.ne.s32.totalorder %s38, %s41
      %p50 = scmp.eq.s32.totalorder %s19, 1
      %p51 = por %p49, %p50
      %p52 = scmp.ne.s32.totalorder %s41, %s42
      %p53 = scmp.eq.s32.totalorder %s19, 0
      %p54 = por %p52, %p53
      %p55 = scmp.ne.s32.totalorder %s41, %s42
      %p56 = scmp.eq.s32.totalorder %s20, 1
      %p57 = por %p55, %p56
      %p59 = scmp.ne.s32.totalorder %s42, %s58
      %p60 = scmp.eq.s32.totalorder %s20, 0
      %p61 = por %p59, %p60
      %s63 = sadd.s32 %s62, 1
      %p66 = scmp.eq.s32.totalorder %s14, 1
      %p67 = scmp.ne.s32.totalorder %s62, %s64
      %p68 = scmp.eq.s32.totalorder %s14, 0
      %p69 = por %p67, %p68
      %p70 = scmp.ne.s32.totalorder %s62, %s64
      %p71 = scmp.eq.s32.totalorder %s19, 1
      %p72 = por %p70, %p71
      %p73 = scmp.ne.s32.totalorder %s64, %s65
      %p74 = scmp.eq.s32.totalorder %s19, 0
      %p75 = por %p73, %p74
      %p76 = scmp.ne.s32.totalorder %s64, %s65
      %p77 = scmp.eq.s32.totalorder %s20, 1
      %p78 = por %p76, %p77
      %p80 = scmp.ne.s32.totalorder %s65, %s79
      %p81 = scmp.eq.s32.totalorder %s20, 0
      %p82 = por %p80, %p81
      %s84 = sadd.s32 %s83, 1
      %p87 = scmp.eq.s32.totalorder %s14, 1
      %p88 = scmp.ne.s32.totalorder %s83, %s85
      %p89 = scmp.eq.s32.totalorder %s14, 0
      %p90 = por %p88, %p89
      %p91 = scmp.ne.s32.totalorder %s83, %s85
      %p92 = scmp.eq.s32.totalorder %s19, 1
      %p93 = por %p91, %p92
      %p94 = scmp.ne.s32.totalorder %s85, %s86
      %p95 = scmp.eq.s32.totalorder %s19, 0
      %p96 = por %p94, %p95
      %p97 = scmp.ne.s32.totalorder %s85, %s86
      %p98 = scmp.eq.s32.totalorder %s20, 1
      %p99 = por %p97, %p98
      %p101 = scmp.ne.s32.totalorder %s86, %s100
      %p102 = scmp.eq.s32.totalorder %s20, 0
      %p103 = por %p101, %p102
      %s105 = sadd.s32 %s104, 1
      %p108 = scmp.eq.s32.totalorder %s14, 1
      %p109 = scmp.ne.s32.totalorder %s104, %s106
      %p110 = scmp.eq.s32.totalorder %s14, 0
      %p111 = por %p109, %p110
      %p112 = scmp.ne.s32.totalorder %s104, %s106
      %p113 = scmp.eq.s32.totalorder %s19, 1
      %p114 = por %p112, %p113
      %p115 = scmp.ne.s32.totalorder %s106, %s107
      %p116 = scmp.eq.s32.totalorder %s19, 0
      %p117 = por %p115, %p116
      %p118 = scmp.ne.s32.totalorder %s106, %s107
      %p119 = scmp.eq.s32.totalorder %s20, 1
      %p120 = por %p118, %p119
      %p122 = scmp.ne.s32.totalorder %s107, %s121
      %p123 = scmp.eq.s32.totalorder %s20, 0
      %p124 = por %p122, %p123
      %s126 = sadd.s32 %s125, 1
      %p129 = scmp.eq.s32.totalorder %s14, 1
      %p130 = scmp.ne.s32.totalorder %s125, %s127
      %p131 = scmp.eq.s32.totalorder %s14, 0
      %p132 = por %p130, %p131
      %p133 = scmp.ne.s32.totalorder %s125, %s127
      %p134 = scmp.eq.s32.totalorder %s19, 1
      %p135 = por %p133, %p134
      %p136 = scmp.ne.s32.totalorder %s127, %s128
      %p137 = scmp.eq.s32.totalorder %s19, 0
      %p138 = por %p136, %p137
      %p139 = scmp.ne.s32.totalorder %s127, %s128
      %p140 = scmp.eq.s32.totalorder %s20, 1
      %p141 = por %p139, %p140
      %p143 = scmp.ne.s32.totalorder %s128, %s142
      %p144 = scmp.eq.s32.totalorder %s20, 0
      %p145 = por %p143, %p144
      %s147 = sadd.s32 %s146, 1
      %p150 = scmp.eq.s32.totalorder %s14, 1
      %p151 = scmp.ne.s32.totalorder %s146, %s148
      %p152 = scmp.eq.s32.totalorder %s14, 0
      %p153 = por %p151, %p152
      %p154 = scmp.ne.s32.totalorder %s146, %s148
      %p155 = scmp.eq.s32.totalorder %s19, 1
      %p156 = por %p154, %p155
      %p157 = scmp.ne.s32.totalorder %s148, %s149
      %p158 = scmp.eq.s32.totalorder %s19, 0
      %p159 = por %p157, %p158
      %p160 = scmp.ne.s32.totalorder %s148, %s149
      %p161 = scmp.eq.s32.totalorder %s20, 1
      %p162 = por %p160, %p161
      %p164 = scmp.ne.s32.totalorder %s149, %s163
      %p165 = scmp.eq.s32.totalorder %s20, 0
      %p166 = por %p164, %p165
      %s167 = ssub.s32 %s21, %s33
      %s168 = ssub.s32 %s22, %s29
      %s169 = sor.u32 %s167, %s168
      %p170 = scmp.eq.s32.totalorder %s169, 0
      %s172 = sadd.s32 %s171, 1
      %s173 = scalar_select %p170, %s171, %s172
      %p176 = pneg %p170
      %p177 = scmp.eq.s32.totalorder %s14, 1
      %p178 = por %p176, %p177
      %p179 = scmp.ne.s32.totalorder %s171, %s174
      %p180 = scmp.eq.s32.totalorder %s14, 0
      %p181 = por %p179, %p180
      %p182 = scmp.ne.s32.totalorder %s171, %s174
      %p183 = scmp.eq.s32.totalorder %s19, 1
      %p184 = por %p182, %p183
      %p185 = scmp.ne.s32.totalorder %s174, %s175
      %p186 = scmp.eq.s32.totalorder %s19, 0
      %p187 = por %p185, %p186
      %p188 = scmp.ne.s32.totalorder %s174, %s175
      %p189 = scmp.eq.s32.totalorder %s20, 1
      %p190 = por %p188, %p189
      %p192 = scmp.ne.s32.totalorder %s175, %s191
      %p193 = scmp.eq.s32.totalorder %s20, 0
      %p194 = por %p192, %p193
      %p195 = scmp.le.s32.totalorder 1, %s14
      %p196 = scmp.lt.s32.totalorder %s14, 3
      %p197 = pnand %p195, %p196
      %p198 = pneg %p197
      // Predicated region
      $region9: #{neural_texture_forward.1} parent=5 // pred_check
        _
      $region10: #{neural_texture_forward.1} parent=5 // pred_check_branch
        %200 = sbr.rel (%p197) target = $region12
      $region11: #{neural_texture_forward.1} parent=5 // pred_region
        %s201 = ssub.s32 %s14, 1
        // Predicated region
        $region13: #{neural_texture_forward.1} parent=11 // pred_check
          %p202 = pneg %p75
        $region14: #{neural_texture_forward.1} parent=11 // pred_check_branch
          %204 = sbr.rel (%p202) target = $region16
        $region15: #{neural_texture_forward.1} parent=11 // pred_region
          _
        $region16: #{neural_texture_forward.1} parent=11 // pred_fallthru
          _
        // Predicated region
        $region17: #{neural_texture_forward.1} parent=11 // pred_check
          %p205 = pneg %p96
        $region18: #{neural_texture_forward.1} parent=11 // pred_check_branch
          %207 = sbr.rel (%p205) target = $region20
        $region19: #{neural_texture_forward.1} parent=11 // pred_region
          %s209 = ssub.s32 6144, 6144
          %210 = vsyncadd [#allocation3], %s209
          %s211 = sshll.u32 [#allocation2], 4
          %s212 = int_to_ptr.vmem [resolvable:$true] %s211
          %217 = dma.hbm_to_vmem [thread:$0]  %s2, 6144, %s212, [#allocation3], 128, 128, 8
        $region20: #{neural_texture_forward.1} parent=11 // pred_fallthru
          _
        // Predicated region
        $region21: #{neural_texture_forward.1} parent=11 // pred_check
          %p218 = pneg %p117
        $region22: #{neural_texture_forward.1} parent=11 // pred_check_branch
          %220 = sbr.rel (%p218) target = $region24
        $region23: #{neural_texture_forward.1} parent=11 // pred_region
          %s222 = ssub.s32 6144, 6144
          %223 = vsyncadd [#allocation5], %s222
          %s224 = sshll.u32 [#allocation4], 4
          %s225 = int_to_ptr.vmem [resolvable:$true] %s224
          %230 = dma.hbm_to_vmem [thread:$0]  %s3, 6144, %s225, [#allocation5], 128, 128, 8
        $region24: #{neural_texture_forward.1} parent=11 // pred_fallthru
          _
        // Predicated region
        $region25: #{neural_texture_forward.1} parent=11 // pred_check
          %p231 = pneg %p138
        $region26: #{neural_texture_forward.1} parent=11 // pred_check_branch
          %233 = sbr.rel (%p231) target = $region28
        $region27: #{neural_texture_forward.1} parent=11 // pred_region
          _
        $region28: #{neural_texture_forward.1} parent=11 // pred_fallthru
          _
        // Predicated region
        $region29: #{neural_texture_forward.1} parent=11 // pred_check
          %p234 = pneg %p159
        $region30: #{neural_texture_forward.1} parent=11 // pred_check_branch
          %236 = sbr.rel (%p234) target = $region32
        $region31: #{neural_texture_forward.1} parent=11 // pred_region
          _
        $region32: #{neural_texture_forward.1} parent=11 // pred_fallthru
          _
      $region12: #{neural_texture_forward.1} parent=5 // pred_fallthru
        _
      %p237 = scmp.lt.s32.totalorder %s14, 2
      // Predicated region
      $region33: #{neural_texture_forward.1} parent=5 // pred_check
        %p238 = pneg %p237
      $region34: #{neural_texture_forward.1} parent=5 // pred_check_branch
        %240 = sbr.rel (%p238) target = $region36
      $region35: #{neural_texture_forward.1} parent=5 // pred_region
        // Predicated region
        $region37: #{neural_texture_forward.1} parent=35 // pred_check
          %p241 = pneg %p48
        $region38: #{neural_texture_forward.1} parent=35 // pred_check_branch
          %243 = sbr.rel (%p241) target = $region40
        $region39: #{neural_texture_forward.1} parent=35 // pred_region
          %s244 = smul.u32 2, %s22
          %p245 = scmp.lt.s32.totalorder %s21, 1
          %s246 = scalar_select %p245, %s21, 1
          %p247 = scmp.lt.s32.totalorder %s244, 1
          %s248 = scalar_select %p247, %s244, 1
          %s249 = smul.addr %s246, 2
          %s250 = sadd.s32 %s248, %s249
          %s251 = smul.addr %s250, 2
          %s252 = scalar_lea.vmem %s0, %s251
          %s253 = smul.u32 2, %s22
        $region40: #{neural_texture_forward.1} parent=35 // pred_fallthru
          _
      $region36: #{neural_texture_forward.1} parent=5 // pred_fallthru
        _
      %p254 = scmp.le.s32.totalorder 1, %s14
      %p255 = scmp.lt.s32.totalorder %s14, 3
      %p256 = pnand %p254, %p255
      %p257 = pneg %p256
      // Predicated region
      $region41: #{neural_texture_forward.1} parent=5 // pred_check
        _
      $region42: #{neural_texture_forward.1} parent=5 // pred_check_branch
        %259 = sbr.rel (%p256) target = $region44
      $region43: #{neural_texture_forward.1} parent=5 // pred_region
        %s260 = ssub.s32 %s14, 1
        // Predicated region
        $region45: #{neural_texture_forward.1} parent=43 // pred_check
          %p261 = pneg %p96
        $region46: #{neural_texture_forward.1} parent=43 // pred_check_branch
          %263 = sbr.rel (%p261) target = $region48
        $region47: #{neural_texture_forward.1} parent=43 // pred_region
          %264 = dma.done [#allocation3], 6144
        $region48: #{neural_texture_forward.1} parent=43 // pred_fallthru
          _
        // Predicated region
        $region49: #{neural_texture_forward.1} parent=43 // pred_check
          %p265 = pneg %p117
        $region50: #{neural_texture_forward.1} parent=43 // pred_check_branch
          %267 = sbr.rel (%p265) target = $region52
        $region51: #{neural_texture_forward.1} parent=43 // pred_region
          %268 = dma.done [#allocation5], 6144
        $region52: #{neural_texture_forward.1} parent=43 // pred_fallthru
          _
        %s269 = smul.u32 2, %s24
        %p270 = scmp.lt.s32.totalorder %s23, 1
        %s271 = scalar_select %p270, %s23, 1
        %p272 = scmp.lt.s32.totalorder %s269, 1
        %s273 = scalar_select %p272, %s269, 1
        %s274 = smul.addr %s271, 2
        %s275 = sadd.s32 %s273, %s274
        %s276 = smul.addr %s275, 2
        %s277 = scalar_lea.vmem %s0, %s276
        %p278 = pneg %p54
        %p279 = pneg %p51
        %p280 = pneg %p75
        %p281 = pneg %p72
        %p282 = pneg %p96
        %p283 = pneg %p93
        %p284 = pneg %p117
        %p285 = pneg %p114
        %p286 = pneg %p138
        %p287 = pneg %p135
        %p288 = pneg %p159
        %p289 = pneg %p156
        %p290 = pneg %p187
        %p291 = pneg %p184
        %s292 = smul.u32 2, %s24
        %p293 = scmp.lt.s32.totalorder %s23, 1
        %s294 = scalar_select %p293, %s23, 1
        %p295 = scmp.lt.s32.totalorder %s292, 1
        %s296 = scalar_select %p295, %s292, 1
        %s297 = smul.addr %s294, 2
        %s298 = sadd.s32 %s296, %s297
        %s299 = smul.addr %s298, 4
        %s300 = scalar_lea.vmem %s6, %s299
        %s301 = smul.u32 2, %s24
        %p302 = scmp.lt.s32.totalorder %s23, 1
        %s303 = scalar_select %p302, %s23, 1
        %p304 = scmp.lt.s32.totalorder %s301, 1
        %s305 = scalar_select %p304, %s301, 1
        %s306 = smul.addr %s303, 2
        %s307 = sadd.s32 %s305, %s306
        %s308 = smul.addr %s307, 2
        %s309 = scalar_lea.vmem %s0, %s308
        %s310 = smul.u32 2, %s24
        %s311 = smul.u32 2, %s24
        %p312 = scmp.lt.s32.totalorder %s23, 1
        %s313 = scalar_select %p312, %s23, 1
        %p314 = scmp.lt.s32.totalorder %s311, 1
        %s315 = scalar_select %p314, %s311, 1
        %s316 = smul.addr %s313, 2
        %s317 = sadd.s32 %s315, %s316
        %s318 = smul.addr %s317, 4
        %s319 = scalar_lea.vmem %s6, %s318
        %s320 = smul.u32 2, %s24
        %v321 = vld [vmem:[%s309] sm:$0xf]
        %v322 = vld [vmem:[%s4] sm:$0xff]
        %v323 = vld [vmem:[%s4 + $0x8] sm:$0xff]
        %v324 = vld [vmem:[%s4 + $0x10] sm:$0xff]
        %v325 = vld [vmem:[%s4 + $0x18] sm:$0xff]
        %v326 = vld [vmem:[%s4 + $0x20] sm:$0xff]
        %v327 = vld [vmem:[%s4 + $0x28] sm:$0xff]
        %v328 = vld [vmem:[%s4 + $0x30] sm:$0xff]
        %v329 = vld [vmem:[%s4 + $0x38] sm:$0xff]
        %v330 = vld [vmem:[%s4 + $0x40] sm:$0xff]
        %v331 = vld [vmem:[%s4 + $0x48] sm:$0xff]
        %v332 = vld [vmem:[%s4 + $0x50] sm:$0xff]
        %v333 = vld [vmem:[%s4 + $0x58] sm:$0xff]
        %v334 = vld [vmem:[%s4 + $0x60] sm:$0xff]
        %v335 = vld [vmem:[%s4 + $0x68] sm:$0xff]
        %v336 = vld [vmem:[%s4 + $0x70] sm:$0xff]
        %v337 = vld [vmem:[%s4 + $0x78] sm:$0xff]
        %v338 = vld [vmem:[%s4 + $0x80] sm:$0xff]
        %v339 = vld [vmem:[%s4 + $0x88] sm:$0xff]
        %v340 = vld [vmem:[%s4 + $0x90] sm:$0xff]
        %v341 = vld [vmem:[%s4 + $0x98] sm:$0xff]
        %v342 = vld [vmem:[%s4 + $0xa0] sm:$0xff]
        %v343 = vld [vmem:[%s4 + $0xa8] sm:$0xff]
        %v344 = vld [vmem:[%s4 + $0xb0] sm:$0xff]
        %v345 = vld [vmem:[%s4 + $0xb8] sm:$0xff]
        %v346 = vld [vmem:[%s4 + $0xc0] sm:$0xff]
        %v347 = vld [vmem:[%s4 + $0xc8] sm:$0xff]
        %v348 = vld [vmem:[%s4 + $0xd0] sm:$0xff]
        %v349 = vld [vmem:[%s4 + $0xd8] sm:$0xff]
        %v350 = vld [vmem:[%s4 + $0xe0] sm:$0xff]
        %v351 = vld [vmem:[%s4 + $0xe8] sm:$0xff]
        %v352 = vld [vmem:[%s4 + $0xf0] sm:$0xff]
        %v353 = vld [vmem:[%s4 + $0xf8] sm:$0xff]
        %v354 = vld [vmem:[%s4 + $0x100] sm:$0xff]
        %v355 = vld [vmem:[%s4 + $0x108] sm:$0xff]
        %v356 = vld [vmem:[%s4 + $0x110] sm:$0xff]
        %v357 = vld [vmem:[%s4 + $0x118] sm:$0xff]
        %v358 = vld [vmem:[%s4 + $0x120] sm:$0xff]
        %v359 = vld [vmem:[%s4 + $0x128] sm:$0xff]
        %v360 = vld [vmem:[%s4 + $0x130] sm:$0xff]
        %v361 = vld [vmem:[%s4 + $0x138] sm:$0xff]
        %v362 = vld [vmem:[%s4 + $0x140] sm:$0xff]
        %v363 = vld [vmem:[%s4 + $0x148] sm:$0xff]
        %v364 = vld [vmem:[%s4 + $0x150] sm:$0xff]
        %v365 = vld [vmem:[%s4 + $0x158] sm:$0xff]
        %v366 = vld [vmem:[%s4 + $0x160] sm:$0xff]
        %v367 = vld [vmem:[%s4 + $0x168] sm:$0xff]
        %v368 = vld [vmem:[%s4 + $0x170] sm:$0xff]
        %v369 = vld [vmem:[%s4 + $0x178] sm:$0xff]
        %v371 = vlaneseq
        %v372 = vshrl.u32 %v371, 7
        %v373 = vsub.s32 0, %v372
        %v374 = vrot.slane %v321, %v373
        %v375 = vlaneseq
        %v376 = vshrl.u32 %v375, 7
        %v377 = vsub.s32 2, %v376
        %v378 = vrot.slane %v321, %v377
        %v381 = vlaneseq
        %v382 = vshrl.u32 %v381, 7
        %v383 = vsub.s32 0, %v382
        %v384 = vrot.slane %v374, %v383
        %v385 = vlaneseq
        %v386 = vshrl.u32 %v385, 7
        %v387 = vsub.s32 0, %v386
        %v388 = vrot.slane %v378, %v387
        %390 = vset.pattern.permute.xlu0 0
        %391 = vperm.xlu0 %390, %v322
        %v392 = vpop.permute.xlu0 %391
        %395 = vset.pattern.permute.xlu0 0
        %396 = vperm.xlu0 %395, %v323
        %v397 = vpop.permute.xlu0 %396
        %400 = vset.pattern.permute.xlu0 0
        %401 = vperm.xlu0 %400, %v324
        %v402 = vpop.permute.xlu0 %401
        %405 = vset.pattern.permute.xlu0 0
        %406 = vperm.xlu0 %405, %v325
        %v407 = vpop.permute.xlu0 %406
        %410 = vset.pattern.permute.xlu0 0
        %411 = vperm.xlu0 %410, %v326
        %v412 = vpop.permute.xlu0 %411
        %415 = vset.pattern.permute.xlu0 0
        %416 = vperm.xlu0 %415, %v327
        %v417 = vpop.permute.xlu0 %416
        %420 = vset.pattern.permute.xlu0 0
        %421 = vperm.xlu0 %420, %v328
        %v422 = vpop.permute.xlu0 %421
        %425 = vset.pattern.permute.xlu0 0
        %426 = vperm.xlu0 %425, %v329
        %v427 = vpop.permute.xlu0 %426
        %430 = vset.pattern.permute.xlu0 0
        %431 = vperm.xlu0 %430, %v330
        %v432 = vpop.permute.xlu0 %431
        %435 = vset.pattern.permute.xlu0 0
        %436 = vperm.xlu0 %435, %v331
        %v437 = vpop.permute.xlu0 %436
        %440 = vset.pattern.permute.xlu0 0
        %441 = vperm.xlu0 %440, %v332
        %v442 = vpop.permute.xlu0 %441
        %445 = vset.pattern.permute.xlu0 0
        %446 = vperm.xlu0 %445, %v333
        %v447 = vpop.permute.xlu0 %446
        %450 = vset.pattern.permute.xlu0 0
        %451 = vperm.xlu0 %450, %v334
        %v452 = vpop.permute.xlu0 %451
        %455 = vset.pattern.permute.xlu0 0
        %456 = vperm.xlu0 %455, %v335
        %v457 = vpop.permute.xlu0 %456
        %460 = vset.pattern.permute.xlu0 0
        %461 = vperm.xlu0 %460, %v336
        %v462 = vpop.permute.xlu0 %461
        %465 = vset.pattern.permute.xlu0 0
        %466 = vperm.xlu0 %465, %v337
        %v467 = vpop.permute.xlu0 %466
        %470 = vset.pattern.permute.xlu0 0
        %471 = vperm.xlu0 %470, %v338
        %v472 = vpop.permute.xlu0 %471
        %475 = vset.pattern.permute.xlu0 0
        %476 = vperm.xlu0 %475, %v339
        %v477 = vpop.permute.xlu0 %476
        %480 = vset.pattern.permute.xlu0 0
        %481 = vperm.xlu0 %480, %v340
        %v482 = vpop.permute.xlu0 %481
        %485 = vset.pattern.permute.xlu0 0
        %486 = vperm.xlu0 %485, %v341
        %v487 = vpop.permute.xlu0 %486
        %490 = vset.pattern.permute.xlu0 0
        %491 = vperm.xlu0 %490, %v342
        %v492 = vpop.permute.xlu0 %491
        %495 = vset.pattern.permute.xlu0 0
        %496 = vperm.xlu0 %495, %v343
        %v497 = vpop.permute.xlu0 %496
        %500 = vset.pattern.permute.xlu0 0
        %501 = vperm.xlu0 %500, %v344
        %v502 = vpop.permute.xlu0 %501
        %505 = vset.pattern.permute.xlu0 0
        %506 = vperm.xlu0 %505, %v345
        %v507 = vpop.permute.xlu0 %506
        %510 = vset.pattern.permute.xlu0 0
        %511 = vperm.xlu0 %510, %v346
        %v512 = vpop.permute.xlu0 %511
        %515 = vset.pattern.permute.xlu0 0
        %516 = vperm.xlu0 %515, %v347
        %v517 = vpop.permute.xlu0 %516
        %520 = vset.pattern.permute.xlu0 0
        %521 = vperm.xlu0 %520, %v348
        %v522 = vpop.permute.xlu0 %521
        %525 = vset.pattern.permute.xlu0 0
        %526 = vperm.xlu0 %525, %v349
        %v527 = vpop.permute.xlu0 %526
        %530 = vset.pattern.permute.xlu0 0
        %531 = vperm.xlu0 %530, %v350
        %v532 = vpop.permute.xlu0 %531
        %535 = vset.pattern.permute.xlu0 0
        %536 = vperm.xlu0 %535, %v351
        %v537 = vpop.permute.xlu0 %536
        %540 = vset.pattern.permute.xlu0 0
        %541 = vperm.xlu0 %540, %v352
        %v542 = vpop.permute.xlu0 %541
        %545 = vset.pattern.permute.xlu0 0
        %546 = vperm.xlu0 %545, %v353
        %v547 = vpop.permute.xlu0 %546
        %550 = vset.pattern.permute.xlu0 0
        %551 = vperm.xlu0 %550, %v354
        %v552 = vpop.permute.xlu0 %551
        %555 = vset.pattern.permute.xlu0 0
        %556 = vperm.xlu0 %555, %v355
        %v557 = vpop.permute.xlu0 %556
        %560 = vset.pattern.permute.xlu0 0
        %561 = vperm.xlu0 %560, %v356
        %v562 = vpop.permute.xlu0 %561
        %565 = vset.pattern.permute.xlu0 0
        %566 = vperm.xlu0 %565, %v357
        %v567 = vpop.permute.xlu0 %566
        %570 = vset.pattern.permute.xlu0 0
        %571 = vperm.xlu0 %570, %v358
        %v572 = vpop.permute.xlu0 %571
        %575 = vset.pattern.permute.xlu0 0
        %576 = vperm.xlu0 %575, %v359
        %v577 = vpop.permute.xlu0 %576
        %580 = vset.pattern.permute.xlu0 0
        %581 = vperm.xlu0 %580, %v360
        %v582 = vpop.permute.xlu0 %581
        %585 = vset.pattern.permute.xlu0 0
        %586 = vperm.xlu0 %585, %v361
        %v587 = vpop.permute.xlu0 %586
        %590 = vset.pattern.permute.xlu0 0
        %591 = vperm.xlu0 %590, %v362
        %v592 = vpop.permute.xlu0 %591
        %595 = vset.pattern.permute.xlu0 0
        %596 = vperm.xlu0 %595, %v363
        %v597 = vpop.permute.xlu0 %596
        %600 = vset.pattern.permute.xlu0 0
        %601 = vperm.xlu0 %600, %v364
        %v602 = vpop.permute.xlu0 %601
        %605 = vset.pattern.permute.xlu0 0
        %606 = vperm.xlu0 %605, %v365
        %v607 = vpop.permute.xlu0 %606
        %610 = vset.pattern.permute.xlu0 0
        %611 = vperm.xlu0 %610, %v366
        %v612 = vpop.permute.xlu0 %611
        %615 = vset.pattern.permute.xlu0 0
        %616 = vperm.xlu0 %615, %v367
        %v617 = vpop.permute.xlu0 %616
        %620 = vset.pattern.permute.xlu0 0
        %621 = vperm.xlu0 %620, %v368
        %v622 = vpop.permute.xlu0 %621
        %625 = vset.pattern.permute.xlu0 0
        %626 = vperm.xlu0 %625, %v369
        %v627 = vpop.permute.xlu0 %626
        %v629 = vmul.f32 %v384, %v392
        %v630 = vmul.f32 %v388, %v392
        %v631 = vmul.f32 %v384, %v397
        %v632 = vmul.f32 %v388, %v397
        %v633 = vmul.f32 %v384, %v402
        %v634 = vmul.f32 %v388, %v402
        %v635 = vmul.f32 %v384, %v407
        %v636 = vmul.f32 %v388, %v407
        %v637 = vmul.f32 %v384, %v412
        %v638 = vmul.f32 %v388, %v412
        %v639 = vmul.f32 %v384, %v417
        %v640 = vmul.f32 %v388, %v417
        %v641 = vmul.f32 %v384, %v422
        %v642 = vmul.f32 %v388, %v422
        %v643 = vmul.f32 %v384, %v427
        %v644 = vmul.f32 %v388, %v427
        %v645 = vmul.f32 %v384, %v432
        %v646 = vmul.f32 %v388, %v432
        %v647 = vmul.f32 %v384, %v437
        %v648 = vmul.f32 %v388, %v437
        %v649 = vmul.f32 %v384, %v442
        %v650 = vmul.f32 %v388, %v442
        %v651 = vmul.f32 %v384, %v447
        %v652 = vmul.f32 %v388, %v447
        %v653 = vmul.f32 %v384, %v452
        %v654 = vmul.f32 %v388, %v452
        %v655 = vmul.f32 %v384, %v457
        %v656 = vmul.f32 %v388, %v457
        %v657 = vmul.f32 %v384, %v462
        %v658 = vmul.f32 %v388, %v462
        %v659 = vmul.f32 %v384, %v467
        %v660 = vmul.f32 %v388, %v467
        %v661 = vmul.f32 %v384, %v472
        %v662 = vmul.f32 %v388, %v472
        %v663 = vmul.f32 %v384, %v477
        %v664 = vmul.f32 %v388, %v477
        %v665 = vmul.f32 %v384, %v482
        %v666 = vmul.f32 %v388, %v482
        %v667 = vmul.f32 %v384, %v487
        %v668 = vmul.f32 %v388, %v487
        %v669 = vmul.f32 %v384, %v492
        %v670 = vmul.f32 %v388, %v492
        %v671 = vmul.f32 %v384, %v497
        %v672 = vmul.f32 %v388, %v497
        %v673 = vmul.f32 %v384, %v502
        %v674 = vmul.f32 %v388, %v502
        %v675 = vmul.f32 %v384, %v507
        %v676 = vmul.f32 %v388, %v507
        %v677 = vmul.f32 %v384, %v512
        %v678 = vmul.f32 %v388, %v512
        %v679 = vmul.f32 %v384, %v517
        %v680 = vmul.f32 %v388, %v517
        %v681 = vmul.f32 %v384, %v522
        %v682 = vmul.f32 %v388, %v522
        %v683 = vmul.f32 %v384, %v527
        %v684 = vmul.f32 %v388, %v527
        %v685 = vmul.f32 %v384, %v532
        %v686 = vmul.f32 %v388, %v532
        %v687 = vmul.f32 %v384, %v537
        %v688 = vmul.f32 %v388, %v537
        %v689 = vmul.f32 %v384, %v542
        %v690 = vmul.f32 %v388, %v542
        %v691 = vmul.f32 %v384, %v547
        %v692 = vmul.f32 %v388, %v547
        %v693 = vmul.f32 %v384, %v552
        %v694 = vmul.f32 %v388, %v552
        %v695 = vmul.f32 %v384, %v557
        %v696 = vmul.f32 %v388, %v557
        %v697 = vmul.f32 %v384, %v562
        %v698 = vmul.f32 %v388, %v562
        %v699 = vmul.f32 %v384, %v567
        %v700 = vmul.f32 %v388, %v567
        %v701 = vmul.f32 %v384, %v572
        %v702 = vmul.f32 %v388, %v572
        %v703 = vmul.f32 %v384, %v577
        %v704 = vmul.f32 %v388, %v577
        %v705 = vmul.f32 %v384, %v582
        %v706 = vmul.f32 %v388, %v582
        %v707 = vmul.f32 %v384, %v587
        %v708 = vmul.f32 %v388, %v587
        %v709 = vmul.f32 %v384, %v592
        %v710 = vmul.f32 %v388, %v592
        %v711 = vmul.f32 %v384, %v597
        %v712 = vmul.f32 %v388, %v597
        %v713 = vmul.f32 %v384, %v602
        %v714 = vmul.f32 %v388, %v602
        %v715 = vmul.f32 %v384, %v607
        %v716 = vmul.f32 %v388, %v607
        %v717 = vmul.f32 %v384, %v612
        %v718 = vmul.f32 %v388, %v612
        %v719 = vmul.f32 %v384, %v617
        %v720 = vmul.f32 %v388, %v617
        %v721 = vmul.f32 %v384, %v622
        %v722 = vmul.f32 %v388, %v622
        %v723 = vmul.f32 %v384, %v627
        %v724 = vmul.f32 %v388, %v627
        %v725 = vld [vmem:[#allocation2] sm:$0xff]
        %v726 = vld [vmem:[#allocation2 + $0x8] sm:$0xff]
        %v727 = vld [vmem:[#allocation2 + $0x10] sm:$0xff]
        %v728 = vld [vmem:[#allocation2 + $0x18] sm:$0xff]
        %v729 = vld [vmem:[#allocation2 + $0x20] sm:$0xff]
        %v730 = vld [vmem:[#allocation2 + $0x28] sm:$0xff]
        %v731 = vld [vmem:[#allocation2 + $0x30] sm:$0xff]
        %v732 = vld [vmem:[#allocation2 + $0x38] sm:$0xff]
        %v733 = vld [vmem:[#allocation2 + $0x40] sm:$0xff]
        %v734 = vld [vmem:[#allocation2 + $0x48] sm:$0xff]
        %v735 = vld [vmem:[#allocation2 + $0x50] sm:$0xff]
        %v736 = vld [vmem:[#allocation2 + $0x58] sm:$0xff]
        %v737 = vld [vmem:[#allocation2 + $0x60] sm:$0xff]
        %v738 = vld [vmem:[#allocation2 + $0x68] sm:$0xff]
        %v739 = vld [vmem:[#allocation2 + $0x70] sm:$0xff]
        %v740 = vld [vmem:[#allocation2 + $0x78] sm:$0xff]
        %v741 = vld [vmem:[#allocation2 + $0x80] sm:$0xff]
        %v742 = vld [vmem:[#allocation2 + $0x88] sm:$0xff]
        %v743 = vld [vmem:[#allocation2 + $0x90] sm:$0xff]
        %v744 = vld [vmem:[#allocation2 + $0x98] sm:$0xff]
        %v745 = vld [vmem:[#allocation2 + $0xa0] sm:$0xff]
        %v746 = vld [vmem:[#allocation2 + $0xa8] sm:$0xff]
        %v747 = vld [vmem:[#allocation2 + $0xb0] sm:$0xff]
        %v748 = vld [vmem:[#allocation2 + $0xb8] sm:$0xff]
        %v749 = vld [vmem:[#allocation2 + $0xc0] sm:$0xff]
        %v750 = vld [vmem:[#allocation2 + $0xc8] sm:$0xff]
        %v751 = vld [vmem:[#allocation2 + $0xd0] sm:$0xff]
        %v752 = vld [vmem:[#allocation2 + $0xd8] sm:$0xff]
        %v753 = vld [vmem:[#allocation2 + $0xe0] sm:$0xff]
        %v754 = vld [vmem:[#allocation2 + $0xe8] sm:$0xff]
        %v755 = vld [vmem:[#allocation2 + $0xf0] sm:$0xff]
        %v756 = vld [vmem:[#allocation2 + $0xf8] sm:$0xff]
        %v757 = vld [vmem:[#allocation2 + $0x100] sm:$0xff]
        %v758 = vld [vmem:[#allocation2 + $0x108] sm:$0xff]
        %v759 = vld [vmem:[#allocation2 + $0x110] sm:$0xff]
        %v760 = vld [vmem:[#allocation2 + $0x118] sm:$0xff]
        %v761 = vld [vmem:[#allocation2 + $0x120] sm:$0xff]
        %v762 = vld [vmem:[#allocation2 + $0x128] sm:$0xff]
        %v763 = vld [vmem:[#allocation2 + $0x130] sm:$0xff]
        %v764 = vld [vmem:[#allocation2 + $0x138] sm:$0xff]
        %v765 = vld [vmem:[#allocation2 + $0x140] sm:$0xff]
        %v766 = vld [vmem:[#allocation2 + $0x148] sm:$0xff]
        %v767 = vld [vmem:[#allocation2 + $0x150] sm:$0xff]
        %v768 = vld [vmem:[#allocation2 + $0x158] sm:$0xff]
        %v769 = vld [vmem:[#allocation2 + $0x160] sm:$0xff]
        %v770 = vld [vmem:[#allocation2 + $0x168] sm:$0xff]
        %v771 = vld [vmem:[#allocation2 + $0x170] sm:$0xff]
        %v772 = vld [vmem:[#allocation2 + $0x178] sm:$0xff]
        %774 = vset.pattern.permute.xlu0 0
        %775 = vperm.xlu0 %774, %v725
        %v776 = vpop.permute.xlu0 %775
        %779 = vset.pattern.permute.xlu0 0
        %780 = vperm.xlu0 %779, %v726
        %v781 = vpop.permute.xlu0 %780
        %784 = vset.pattern.permute.xlu0 0
        %785 = vperm.xlu0 %784, %v727
        %v786 = vpop.permute.xlu0 %785
        %789 = vset.pattern.permute.xlu0 0
        %790 = vperm.xlu0 %789, %v728
        %v791 = vpop.permute.xlu0 %790
        %794 = vset.pattern.permute.xlu0 0
        %795 = vperm.xlu0 %794, %v729
        %v796 = vpop.permute.xlu0 %795
        %799 = vset.pattern.permute.xlu0 0
        %800 = vperm.xlu0 %799, %v730
        %v801 = vpop.permute.xlu0 %800
        %804 = vset.pattern.permute.xlu0 0
        %805 = vperm.xlu0 %804, %v731
        %v806 = vpop.permute.xlu0 %805
        %809 = vset.pattern.permute.xlu0 0
        %810 = vperm.xlu0 %809, %v732
        %v811 = vpop.permute.xlu0 %810
        %814 = vset.pattern.permute.xlu0 0
        %815 = vperm.xlu0 %814, %v733
        %v816 = vpop.permute.xlu0 %815
        %819 = vset.pattern.permute.xlu0 0
        %820 = vperm.xlu0 %819, %v734
        %v821 = vpop.permute.xlu0 %820
        %824 = vset.pattern.permute.xlu0 0
        %825 = vperm.xlu0 %824, %v735
        %v826 = vpop.permute.xlu0 %825
        %829 = vset.pattern.permute.xlu0 0
        %830 = vperm.xlu0 %829, %v736
        %v831 = vpop.permute.xlu0 %830
        %834 = vset.pattern.permute.xlu0 0
        %835 = vperm.xlu0 %834, %v737
        %v836 = vpop.permute.xlu0 %835
        %839 = vset.pattern.permute.xlu0 0
        %840 = vperm.xlu0 %839, %v738
        %v841 = vpop.permute.xlu0 %840
        %844 = vset.pattern.permute.xlu0 0
        %845 = vperm.xlu0 %844, %v739
        %v846 = vpop.permute.xlu0 %845
        %849 = vset.pattern.permute.xlu0 0
        %850 = vperm.xlu0 %849, %v740
        %v851 = vpop.permute.xlu0 %850
        %854 = vset.pattern.permute.xlu0 0
        %855 = vperm.xlu0 %854, %v741
        %v856 = vpop.permute.xlu0 %855
        %859 = vset.pattern.permute.xlu0 0
        %860 = vperm.xlu0 %859, %v742
        %v861 = vpop.permute.xlu0 %860
        %864 = vset.pattern.permute.xlu0 0
        %865 = vperm.xlu0 %864, %v743
        %v866 = vpop.permute.xlu0 %865
        %869 = vset.pattern.permute.xlu0 0
        %870 = vperm.xlu0 %869, %v744
        %v871 = vpop.permute.xlu0 %870
        %874 = vset.pattern.permute.xlu0 0
        %875 = vperm.xlu0 %874, %v745
        %v876 = vpop.permute.xlu0 %875
        %879 = vset.pattern.permute.xlu0 0
        %880 = vperm.xlu0 %879, %v746
        %v881 = vpop.permute.xlu0 %880
        %884 = vset.pattern.permute.xlu0 0
        %885 = vperm.xlu0 %884, %v747
        %v886 = vpop.permute.xlu0 %885
        %889 = vset.pattern.permute.xlu0 0
        %890 = vperm.xlu0 %889, %v748
        %v891 = vpop.permute.xlu0 %890
        %894 = vset.pattern.permute.xlu0 0
        %895 = vperm.xlu0 %894, %v749
        %v896 = vpop.permute.xlu0 %895
        %899 = vset.pattern.permute.xlu0 0
        %900 = vperm.xlu0 %899, %v750
        %v901 = vpop.permute.xlu0 %900
        %904 = vset.pattern.permute.xlu0 0
        %905 = vperm.xlu0 %904, %v751
        %v906 = vpop.permute.xlu0 %905
        %909 = vset.pattern.permute.xlu0 0
        %910 = vperm.xlu0 %909, %v752
        %v911 = vpop.permute.xlu0 %910
        %914 = vset.pattern.permute.xlu0 0
        %915 = vperm.xlu0 %914, %v753
        %v916 = vpop.permute.xlu0 %915
        %919 = vset.pattern.permute.xlu0 0
        %920 = vperm.xlu0 %919, %v754
        %v921 = vpop.permute.xlu0 %920
        %924 = vset.pattern.permute.xlu0 0
        %925 = vperm.xlu0 %924, %v755
        %v926 = vpop.permute.xlu0 %925
        %929 = vset.pattern.permute.xlu0 0
        %930 = vperm.xlu0 %929, %v756
        %v931 = vpop.permute.xlu0 %930
        %934 = vset.pattern.permute.xlu0 0
        %935 = vperm.xlu0 %934, %v757
        %v936 = vpop.permute.xlu0 %935
        %939 = vset.pattern.permute.xlu0 0
        %940 = vperm.xlu0 %939, %v758
        %v941 = vpop.permute.xlu0 %940
        %944 = vset.pattern.permute.xlu0 0
        %945 = vperm.xlu0 %944, %v759
        %v946 = vpop.permute.xlu0 %945
        %949 = vset.pattern.permute.xlu0 0
        %950 = vperm.xlu0 %949, %v760
        %v951 = vpop.permute.xlu0 %950
        %954 = vset.pattern.permute.xlu0 0
        %955 = vperm.xlu0 %954, %v761
        %v956 = vpop.permute.xlu0 %955
        %959 = vset.pattern.permute.xlu0 0
        %960 = vperm.xlu0 %959, %v762
        %v961 = vpop.permute.xlu0 %960
        %964 = vset.pattern.permute.xlu0 0
        %965 = vperm.xlu0 %964, %v763
        %v966 = vpop.permute.xlu0 %965
        %969 = vset.pattern.permute.xlu0 0
        %970 = vperm.xlu0 %969, %v764
        %v971 = vpop.permute.xlu0 %970
        %974 = vset.pattern.permute.xlu0 0
        %975 = vperm.xlu0 %974, %v765
        %v976 = vpop.permute.xlu0 %975
        %979 = vset.pattern.permute.xlu0 0
        %980 = vperm.xlu0 %979, %v766
        %v981 = vpop.permute.xlu0 %980
        %984 = vset.pattern.permute.xlu0 0
        %985 = vperm.xlu0 %984, %v767
        %v986 = vpop.permute.xlu0 %985
        %989 = vset.pattern.permute.xlu0 0
        %990 = vperm.xlu0 %989, %v768
        %v991 = vpop.permute.xlu0 %990
        %994 = vset.pattern.permute.xlu0 0
        %995 = vperm.xlu0 %994, %v769
        %v996 = vpop.permute.xlu0 %995
        %999 = vset.pattern.permute.xlu0 0
        %1000 = vperm.xlu0 %999, %v770
        %v1001 = vpop.permute.xlu0 %1000
        %1004 = vset.pattern.permute.xlu0 0
        %1005 = vperm.xlu0 %1004, %v771
        %v1006 = vpop.permute.xlu0 %1005
        %1009 = vset.pattern.permute.xlu0 0
        %1010 = vperm.xlu0 %1009, %v772
        %v1011 = vpop.permute.xlu0 %1010
        %v1013 = vsub.f32 %v629, %v776
        %v1014 = vsub.f32 %v630, %v776
        %v1015 = vsub.f32 %v631, %v781
        %v1016 = vsub.f32 %v632, %v781
        %v1017 = vsub.f32 %v633, %v786
        %v1018 = vsub.f32 %v634, %v786
        %v1019 = vsub.f32 %v635, %v791
        %v1020 = vsub.f32 %v636, %v791
        %v1021 = vsub.f32 %v637, %v796
        %v1022 = vsub.f32 %v638, %v796
        %v1023 = vsub.f32 %v639, %v801
        %v1024 = vsub.f32 %v640, %v801
        %v1025 = vsub.f32 %v641, %v806
        %v1026 = vsub.f32 %v642, %v806
        %v1027 = vsub.f32 %v643, %v811
        %v1028 = vsub.f32 %v644, %v811
        %v1029 = vsub.f32 %v645, %v816
        %v1030 = vsub.f32 %v646, %v816
        %v1031 = vsub.f32 %v647, %v821
        %v1032 = vsub.f32 %v648, %v821
        %v1033 = vsub.f32 %v649, %v826
        %v1034 = vsub.f32 %v650, %v826
        %v1035 = vsub.f32 %v651, %v831
        %v1036 = vsub.f32 %v652, %v831
        %v1037 = vsub.f32 %v653, %v836
        %v1038 = vsub.f32 %v654, %v836
        %v1039 = vsub.f32 %v655, %v841
        %v1040 = vsub.f32 %v656, %v841
        %v1041 = vsub.f32 %v657, %v846
        %v1042 = vsub.f32 %v658, %v846
        %v1043 = vsub.f32 %v659, %v851
        %v1044 = vsub.f32 %v660, %v851
        %v1045 = vsub.f32 %v661, %v856
        %v1046 = vsub.f32 %v662, %v856
        %v1047 = vsub.f32 %v663, %v861
        %v1048 = vsub.f32 %v664, %v861
        %v1049 = vsub.f32 %v665, %v866
        %v1050 = vsub.f32 %v666, %v866
        %v1051 = vsub.f32 %v667, %v871
        %v1052 = vsub.f32 %v668, %v871
        %v1053 = vsub.f32 %v669, %v876
        %v1054 = vsub.f32 %v670, %v876
        %v1055 = vsub.f32 %v671, %v881
        %v1056 = vsub.f32 %v672, %v881
        %v1057 = vsub.f32 %v673, %v886
        %v1058 = vsub.f32 %v674, %v886
        %v1059 = vsub.f32 %v675, %v891
        %v1060 = vsub.f32 %v676, %v891
        %v1061 = vsub.f32 %v677, %v896
        %v1062 = vsub.f32 %v678, %v896
        %v1063 = vsub.f32 %v679, %v901
        %v1064 = vsub.f32 %v680, %v901
        %v1065 = vsub.f32 %v681, %v906
        %v1066 = vsub.f32 %v682, %v906
        %v1067 = vsub.f32 %v683, %v911
        %v1068 = vsub.f32 %v684, %v911
        %v1069 = vsub.f32 %v685, %v916
        %v1070 = vsub.f32 %v686, %v916
        %v1071 = vsub.f32 %v687, %v921
        %v1072 = vsub.f32 %v688, %v921
        %v1073 = vsub.f32 %v689, %v926
        %v1074 = vsub.f32 %v690, %v926
        %v1075 = vsub.f32 %v691, %v931
        %v1076 = vsub.f32 %v692, %v931
        %v1077 = vsub.f32 %v693, %v936
        %v1078 = vsub.f32 %v694, %v936
        %v1079 = vsub.f32 %v695, %v941
        %v1080 = vsub.f32 %v696, %v941
        %v1081 = vsub.f32 %v697, %v946
        %v1082 = vsub.f32 %v698, %v946
        %v1083 = vsub.f32 %v699, %v951
        %v1084 = vsub.f32 %v700, %v951
        %v1085 = vsub.f32 %v701, %v956
        %v1086 = vsub.f32 %v702, %v956
        %v1087 = vsub.f32 %v703, %v961
        %v1088 = vsub.f32 %v704, %v961
        %v1089 = vsub.f32 %v705, %v966
        %v1090 = vsub.f32 %v706, %v966
        %v1091 = vsub.f32 %v707, %v971
        %v1092 = vsub.f32 %v708, %v971
        %v1093 = vsub.f32 %v709, %v976
        %v1094 = vsub.f32 %v710, %v976
        %v1095 = vsub.f32 %v711, %v981
        %v1096 = vsub.f32 %v712, %v981
        %v1097 = vsub.f32 %v713, %v986
        %v1098 = vsub.f32 %v714, %v986
        %v1099 = vsub.f32 %v715, %v991
        %v1100 = vsub.f32 %v716, %v991
        %v1101 = vsub.f32 %v717, %v996
        %v1102 = vsub.f32 %v718, %v996
        %v1103 = vsub.f32 %v719, %v1001
        %v1104 = vsub.f32 %v720, %v1001
        %v1105 = vsub.f32 %v721, %v1006
        %v1106 = vsub.f32 %v722, %v1006
        %v1107 = vsub.f32 %v723, %v1011
        %v1108 = vsub.f32 %v724, %v1011
        %v1109 = vld [vmem:[%s5] sm:$0xff]
        %v1110 = vld [vmem:[%s5 + $0x8] sm:$0xff]
        %v1111 = vld [vmem:[%s5 + $0x10] sm:$0xff]
        %v1112 = vld [vmem:[%s5 + $0x18] sm:$0xff]
        %v1113 = vld [vmem:[%s5 + $0x20] sm:$0xff]
        %v1114 = vld [vmem:[%s5 + $0x28] sm:$0xff]
        %v1115 = vld [vmem:[%s5 + $0x30] sm:$0xff]
        %v1116 = vld [vmem:[%s5 + $0x38] sm:$0xff]
        %v1117 = vld [vmem:[%s5 + $0x40] sm:$0xff]
        %v1118 = vld [vmem:[%s5 + $0x48] sm:$0xff]
        %v1119 = vld [vmem:[%s5 + $0x50] sm:$0xff]
        %v1120 = vld [vmem:[%s5 + $0x58] sm:$0xff]
        %v1121 = vld [vmem:[%s5 + $0x60] sm:$0xff]
        %v1122 = vld [vmem:[%s5 + $0x68] sm:$0xff]
        %v1123 = vld [vmem:[%s5 + $0x70] sm:$0xff]
        %v1124 = vld [vmem:[%s5 + $0x78] sm:$0xff]
        %v1125 = vld [vmem:[%s5 + $0x80] sm:$0xff]
        %v1126 = vld [vmem:[%s5 + $0x88] sm:$0xff]
        %v1127 = vld [vmem:[%s5 + $0x90] sm:$0xff]
        %v1128 = vld [vmem:[%s5 + $0x98] sm:$0xff]
        %v1129 = vld [vmem:[%s5 + $0xa0] sm:$0xff]
        %v1130 = vld [vmem:[%s5 + $0xa8] sm:$0xff]
        %v1131 = vld [vmem:[%s5 + $0xb0] sm:$0xff]
        %v1132 = vld [vmem:[%s5 + $0xb8] sm:$0xff]
        %v1133 = vld [vmem:[%s5 + $0xc0] sm:$0xff]
        %v1134 = vld [vmem:[%s5 + $0xc8] sm:$0xff]
        %v1135 = vld [vmem:[%s5 + $0xd0] sm:$0xff]
        %v1136 = vld [vmem:[%s5 + $0xd8] sm:$0xff]
        %v1137 = vld [vmem:[%s5 + $0xe0] sm:$0xff]
        %v1138 = vld [vmem:[%s5 + $0xe8] sm:$0xff]
        %v1139 = vld [vmem:[%s5 + $0xf0] sm:$0xff]
        %v1140 = vld [vmem:[%s5 + $0xf8] sm:$0xff]
        %v1141 = vld [vmem:[%s5 + $0x100] sm:$0xff]
        %v1142 = vld [vmem:[%s5 + $0x108] sm:$0xff]
        %v1143 = vld [vmem:[%s5 + $0x110] sm:$0xff]
        %v1144 = vld [vmem:[%s5 + $0x118] sm:$0xff]
        %v1145 = vld [vmem:[%s5 + $0x120] sm:$0xff]
        %v1146 = vld [vmem:[%s5 + $0x128] sm:$0xff]
        %v1147 = vld [vmem:[%s5 + $0x130] sm:$0xff]
        %v1148 = vld [vmem:[%s5 + $0x138] sm:$0xff]
        %v1149 = vld [vmem:[%s5 + $0x140] sm:$0xff]
        %v1150 = vld [vmem:[%s5 + $0x148] sm:$0xff]
        %v1151 = vld [vmem:[%s5 + $0x150] sm:$0xff]
        %v1152 = vld [vmem:[%s5 + $0x158] sm:$0xff]
        %v1153 = vld [vmem:[%s5 + $0x160] sm:$0xff]
        %v1154 = vld [vmem:[%s5 + $0x168] sm:$0xff]
        %v1155 = vld [vmem:[%s5 + $0x170] sm:$0xff]
        %v1156 = vld [vmem:[%s5 + $0x178] sm:$0xff]
        %v1157 = vlaneseq
        %v1158 = vshrl.u32 %v1157, 7
        %v1159 = vsub.s32 1, %v1158
        %v1160 = vrot.slane %v321, %v1159
        %v1161 = vlaneseq
        %v1162 = vshrl.u32 %v1161, 7
        %v1163 = vsub.s32 3, %v1162
        %v1164 = vrot.slane %v321, %v1163
        %v1167 = vlaneseq
        %v1168 = vshrl.u32 %v1167, 7
        %v1169 = vsub.s32 1, %v1168
        %v1170 = vrot.slane %v1160, %v1169
        %v1171 = vlaneseq
        %v1172 = vshrl.u32 %v1171, 7
        %v1173 = vsub.s32 1, %v1172
        %v1174 = vrot.slane %v1164, %v1173
        %1176 = vset.pattern.permute.xlu0 0
        %1177 = vperm.xlu0 %1176, %v1109
        %v1178 = vpop.permute.xlu0 %1177
        %1181 = vset.pattern.permute.xlu0 0
        %1182 = vperm.xlu0 %1181, %v1110
        %v1183 = vpop.permute.xlu0 %1182
        %1186 = vset.pattern.permute.xlu0 0
        %1187 = vperm.xlu0 %1186, %v1111
        %v1188 = vpop.permute.xlu0 %1187
        %1191 = vset.pattern.permute.xlu0 0
        %1192 = vperm.xlu0 %1191, %v1112
        %v1193 = vpop.permute.xlu0 %1192
        %1196 = vset.pattern.permute.xlu0 0
        %1197 = vperm.xlu0 %1196, %v1113
        %v1198 = vpop.permute.xlu0 %1197
        %1201 = vset.pattern.permute.xlu0 0
        %1202 = vperm.xlu0 %1201, %v1114
        %v1203 = vpop.permute.xlu0 %1202
        %1206 = vset.pattern.permute.xlu0 0
        %1207 = vperm.xlu0 %1206, %v1115
        %v1208 = vpop.permute.xlu0 %1207
        %1211 = vset.pattern.permute.xlu0 0
        %1212 = vperm.xlu0 %1211, %v1116
        %v1213 = vpop.permute.xlu0 %1212
        %1216 = vset.pattern.permute.xlu0 0
        %1217 = vperm.xlu0 %1216, %v1117
        %v1218 = vpop.permute.xlu0 %1217
        %1221 = vset.pattern.permute.xlu0 0
        %1222 = vperm.xlu0 %1221, %v1118
        %v1223 = vpop.permute.xlu0 %1222
        %1226 = vset.pattern.permute.xlu0 0
        %1227 = vperm.xlu0 %1226, %v1119
        %v1228 = vpop.permute.xlu0 %1227
        %1231 = vset.pattern.permute.xlu0 0
        %1232 = vperm.xlu0 %1231, %v1120
        %v1233 = vpop.permute.xlu0 %1232
        %1236 = vset.pattern.permute.xlu0 0
        %1237 = vperm.xlu0 %1236, %v1121
        %v1238 = vpop.permute.xlu0 %1237
        %1241 = vset.pattern.permute.xlu0 0
        %1242 = vperm.xlu0 %1241, %v1122
        %v1243 = vpop.permute.xlu0 %1242
        %1246 = vset.pattern.permute.xlu0 0
        %1247 = vperm.xlu0 %1246, %v1123
        %v1248 = vpop.permute.xlu0 %1247
        %1251 = vset.pattern.permute.xlu0 0
        %1252 = vperm.xlu0 %1251, %v1124
        %v1253 = vpop.permute.xlu0 %1252
        %1256 = vset.pattern.permute.xlu0 0
        %1257 = vperm.xlu0 %1256, %v1125
        %v1258 = vpop.permute.xlu0 %1257
        %1261 = vset.pattern.permute.xlu0 0
        %1262 = vperm.xlu0 %1261, %v1126
        %v1263 = vpop.permute.xlu0 %1262
        %1266 = vset.pattern.permute.xlu0 0
        %1267 = vperm.xlu0 %1266, %v1127
        %v1268 = vpop.permute.xlu0 %1267
        %1271 = vset.pattern.permute.xlu0 0
        %1272 = vperm.xlu0 %1271, %v1128
        %v1273 = vpop.permute.xlu0 %1272
        %1276 = vset.pattern.permute.xlu0 0
        %1277 = vperm.xlu0 %1276, %v1129
        %v1278 = vpop.permute.xlu0 %1277
        %1281 = vset.pattern.permute.xlu0 0
        %1282 = vperm.xlu0 %1281, %v1130
        %v1283 = vpop.permute.xlu0 %1282
        %1286 = vset.pattern.permute.xlu0 0
        %1287 = vperm.xlu0 %1286, %v1131
        %v1288 = vpop.permute.xlu0 %1287
        %1291 = vset.pattern.permute.xlu0 0
        %1292 = vperm.xlu0 %1291, %v1132
        %v1293 = vpop.permute.xlu0 %1292
        %1296 = vset.pattern.permute.xlu0 0
        %1297 = vperm.xlu0 %1296, %v1133
        %v1298 = vpop.permute.xlu0 %1297
        %1301 = vset.pattern.permute.xlu0 0
        %1302 = vperm.xlu0 %1301, %v1134
        %v1303 = vpop.permute.xlu0 %1302
        %1306 = vset.pattern.permute.xlu0 0
        %1307 = vperm.xlu0 %1306, %v1135
        %v1308 = vpop.permute.xlu0 %1307
        %1311 = vset.pattern.permute.xlu0 0
        %1312 = vperm.xlu0 %1311, %v1136
        %v1313 = vpop.permute.xlu0 %1312
        %1316 = vset.pattern.permute.xlu0 0
        %1317 = vperm.xlu0 %1316, %v1137
        %v1318 = vpop.permute.xlu0 %1317
        %1321 = vset.pattern.permute.xlu0 0
        %1322 = vperm.xlu0 %1321, %v1138
        %v1323 = vpop.permute.xlu0 %1322
        %1326 = vset.pattern.permute.xlu0 0
        %1327 = vperm.xlu0 %1326, %v1139
        %v1328 = vpop.permute.xlu0 %1327
        %1331 = vset.pattern.permute.xlu0 0
        %1332 = vperm.xlu0 %1331, %v1140
        %v1333 = vpop.permute.xlu0 %1332
        %1336 = vset.pattern.permute.xlu0 0
        %1337 = vperm.xlu0 %1336, %v1141
        %v1338 = vpop.permute.xlu0 %1337
        %1341 = vset.pattern.permute.xlu0 0
        %1342 = vperm.xlu0 %1341, %v1142
        %v1343 = vpop.permute.xlu0 %1342
        %1346 = vset.pattern.permute.xlu0 0
        %1347 = vperm.xlu0 %1346, %v1143
        %v1348 = vpop.permute.xlu0 %1347
        %1351 = vset.pattern.permute.xlu0 0
        %1352 = vperm.xlu0 %1351, %v1144
        %v1353 = vpop.permute.xlu0 %1352
        %1356 = vset.pattern.permute.xlu0 0
        %1357 = vperm.xlu0 %1356, %v1145
        %v1358 = vpop.permute.xlu0 %1357
        %1361 = vset.pattern.permute.xlu0 0
        %1362 = vperm.xlu0 %1361, %v1146
        %v1363 = vpop.permute.xlu0 %1362
        %1366 = vset.pattern.permute.xlu0 0
        %1367 = vperm.xlu0 %1366, %v1147
        %v1368 = vpop.permute.xlu0 %1367
        %1371 = vset.pattern.permute.xlu0 0
        %1372 = vperm.xlu0 %1371, %v1148
        %v1373 = vpop.permute.xlu0 %1372
        %1376 = vset.pattern.permute.xlu0 0
        %1377 = vperm.xlu0 %1376, %v1149
        %v1378 = vpop.permute.xlu0 %1377
        %1381 = vset.pattern.permute.xlu0 0
        %1382 = vperm.xlu0 %1381, %v1150
        %v1383 = vpop.permute.xlu0 %1382
        %1386 = vset.pattern.permute.xlu0 0
        %1387 = vperm.xlu0 %1386, %v1151
        %v1388 = vpop.permute.xlu0 %1387
        %1391 = vset.pattern.permute.xlu0 0
        %1392 = vperm.xlu0 %1391, %v1152
        %v1393 = vpop.permute.xlu0 %1392
        %1396 = vset.pattern.permute.xlu0 0
        %1397 = vperm.xlu0 %1396, %v1153
        %v1398 = vpop.permute.xlu0 %1397
        %1401 = vset.pattern.permute.xlu0 0
        %1402 = vperm.xlu0 %1401, %v1154
        %v1403 = vpop.permute.xlu0 %1402
        %1406 = vset.pattern.permute.xlu0 0
        %1407 = vperm.xlu0 %1406, %v1155
        %v1408 = vpop.permute.xlu0 %1407
        %1411 = vset.pattern.permute.xlu0 0
        %1412 = vperm.xlu0 %1411, %v1156
        %v1413 = vpop.permute.xlu0 %1412
        %v1415 = vmul.f32 %v1170, %v1178
        %v1416 = vmul.f32 %v1174, %v1178
        %v1417 = vmul.f32 %v1170, %v1183
        %v1418 = vmul.f32 %v1174, %v1183
        %v1419 = vmul.f32 %v1170, %v1188
        %v1420 = vmul.f32 %v1174, %v1188
        %v1421 = vmul.f32 %v1170, %v1193
        %v1422 = vmul.f32 %v1174, %v1193
        %v1423 = vmul.f32 %v1170, %v1198
        %v1424 = vmul.f32 %v1174, %v1198
        %v1425 = vmul.f32 %v1170, %v1203
        %v1426 = vmul.f32 %v1174, %v1203
        %v1427 = vmul.f32 %v1170, %v1208
        %v1428 = vmul.f32 %v1174, %v1208
        %v1429 = vmul.f32 %v1170, %v1213
        %v1430 = vmul.f32 %v1174, %v1213
        %v1431 = vmul.f32 %v1170, %v1218
        %v1432 = vmul.f32 %v1174, %v1218
        %v1433 = vmul.f32 %v1170, %v1223
        %v1434 = vmul.f32 %v1174, %v1223
        %v1435 = vmul.f32 %v1170, %v1228
        %v1436 = vmul.f32 %v1174, %v1228
        %v1437 = vmul.f32 %v1170, %v1233
        %v1438 = vmul.f32 %v1174, %v1233
        %v1439 = vmul.f32 %v1170, %v1238
        %v1440 = vmul.f32 %v1174, %v1238
        %v1441 = vmul.f32 %v1170, %v1243
        %v1442 = vmul.f32 %v1174, %v1243
        %v1443 = vmul.f32 %v1170, %v1248
        %v1444 = vmul.f32 %v1174, %v1248
        %v1445 = vmul.f32 %v1170, %v1253
        %v1446 = vmul.f32 %v1174, %v1253
        %v1447 = vmul.f32 %v1170, %v1258
        %v1448 = vmul.f32 %v1174, %v1258
        %v1449 = vmul.f32 %v1170, %v1263
        %v1450 = vmul.f32 %v1174, %v1263
        %v1451 = vmul.f32 %v1170, %v1268
        %v1452 = vmul.f32 %v1174, %v1268
        %v1453 = vmul.f32 %v1170, %v1273
        %v1454 = vmul.f32 %v1174, %v1273
        %v1455 = vmul.f32 %v1170, %v1278
        %v1456 = vmul.f32 %v1174, %v1278
        %v1457 = vmul.f32 %v1170, %v1283
        %v1458 = vmul.f32 %v1174, %v1283
        %v1459 = vmul.f32 %v1170, %v1288
        %v1460 = vmul.f32 %v1174, %v1288
        %v1461 = vmul.f32 %v1170, %v1293
        %v1462 = vmul.f32 %v1174, %v1293
        %v1463 = vmul.f32 %v1170, %v1298
        %v1464 = vmul.f32 %v1174, %v1298
        %v1465 = vmul.f32 %v1170, %v1303
        %v1466 = vmul.f32 %v1174, %v1303
        %v1467 = vmul.f32 %v1170, %v1308
        %v1468 = vmul.f32 %v1174, %v1308
        %v1469 = vmul.f32 %v1170, %v1313
        %v1470 = vmul.f32 %v1174, %v1313
        %v1471 = vmul.f32 %v1170, %v1318
        %v1472 = vmul.f32 %v1174, %v1318
        %v1473 = vmul.f32 %v1170, %v1323
        %v1474 = vmul.f32 %v1174, %v1323
        %v1475 = vmul.f32 %v1170, %v1328
        %v1476 = vmul.f32 %v1174, %v1328
        %v1477 = vmul.f32 %v1170, %v1333
        %v1478 = vmul.f32 %v1174, %v1333
        %v1479 = vmul.f32 %v1170, %v1338
        %v1480 = vmul.f32 %v1174, %v1338
        %v1481 = vmul.f32 %v1170, %v1343
        %v1482 = vmul.f32 %v1174, %v1343
        %v1483 = vmul.f32 %v1170, %v1348
        %v1484 = vmul.f32 %v1174, %v1348
        %v1485 = vmul.f32 %v1170, %v1353
        %v1486 = vmul.f32 %v1174, %v1353
        %v1487 = vmul.f32 %v1170, %v1358
        %v1488 = vmul.f32 %v1174, %v1358
        %v1489 = vmul.f32 %v1170, %v1363
        %v1490 = vmul.f32 %v1174, %v1363
        %v1491 = vmul.f32 %v1170, %v1368
        %v1492 = vmul.f32 %v1174, %v1368
        %v1493 = vmul.f32 %v1170, %v1373
        %v1494 = vmul.f32 %v1174, %v1373
        %v1495 = vmul.f32 %v1170, %v1378
        %v1496 = vmul.f32 %v1174, %v1378
        %v1497 = vmul.f32 %v1170, %v1383
        %v1498 = vmul.f32 %v1174, %v1383
        %v1499 = vmul.f32 %v1170, %v1388
        %v1500 = vmul.f32 %v1174, %v1388
        %v1501 = vmul.f32 %v1170, %v1393
        %v1502 = vmul.f32 %v1174, %v1393
        %v1503 = vmul.f32 %v1170, %v1398
        %v1504 = vmul.f32 %v1174, %v1398
        %v1505 = vmul.f32 %v1170, %v1403
        %v1506 = vmul.f32 %v1174, %v1403
        %v1507 = vmul.f32 %v1170, %v1408
        %v1508 = vmul.f32 %v1174, %v1408
        %v1509 = vmul.f32 %v1170, %v1413
        %v1510 = vmul.f32 %v1174, %v1413
        %v1511 = vld [vmem:[#allocation4] sm:$0xff]
        %v1512 = vld [vmem:[#allocation4 + $0x8] sm:$0xff]
        %v1513 = vld [vmem:[#allocation4 + $0x10] sm:$0xff]
        %v1514 = vld [vmem:[#allocation4 + $0x18] sm:$0xff]
        %v1515 = vld [vmem:[#allocation4 + $0x20] sm:$0xff]
        %v1516 = vld [vmem:[#allocation4 + $0x28] sm:$0xff]
        %v1517 = vld [vmem:[#allocation4 + $0x30] sm:$0xff]
        %v1518 = vld [vmem:[#allocation4 + $0x38] sm:$0xff]
        %v1519 = vld [vmem:[#allocation4 + $0x40] sm:$0xff]
        %v1520 = vld [vmem:[#allocation4 + $0x48] sm:$0xff]
        %v1521 = vld [vmem:[#allocation4 + $0x50] sm:$0xff]
        %v1522 = vld [vmem:[#allocation4 + $0x58] sm:$0xff]
        %v1523 = vld [vmem:[#allocation4 + $0x60] sm:$0xff]
        %v1524 = vld [vmem:[#allocation4 + $0x68] sm:$0xff]
        %v1525 = vld [vmem:[#allocation4 + $0x70] sm:$0xff]
        %v1526 = vld [vmem:[#allocation4 + $0x78] sm:$0xff]
        %v1527 = vld [vmem:[#allocation4 + $0x80] sm:$0xff]
        %v1528 = vld [vmem:[#allocation4 + $0x88] sm:$0xff]
        %v1529 = vld [vmem:[#allocation4 + $0x90] sm:$0xff]
        %v1530 = vld [vmem:[#allocation4 + $0x98] sm:$0xff]
        %v1531 = vld [vmem:[#allocation4 + $0xa0] sm:$0xff]
        %v1532 = vld [vmem:[#allocation4 + $0xa8] sm:$0xff]
        %v1533 = vld [vmem:[#allocation4 + $0xb0] sm:$0xff]
        %v1534 = vld [vmem:[#allocation4 + $0xb8] sm:$0xff]
        %v1535 = vld [vmem:[#allocation4 + $0xc0] sm:$0xff]
        %v1536 = vld [vmem:[#allocation4 + $0xc8] sm:$0xff]
        %v1537 = vld [vmem:[#allocation4 + $0xd0] sm:$0xff]
        %v1538 = vld [vmem:[#allocation4 + $0xd8] sm:$0xff]
        %v1539 = vld [vmem:[#allocation4 + $0xe0] sm:$0xff]
        %v1540 = vld [vmem:[#allocation4 + $0xe8] sm:$0xff]
        %v1541 = vld [vmem:[#allocation4 + $0xf0] sm:$0xff]
        %v1542 = vld [vmem:[#allocation4 + $0xf8] sm:$0xff]
        %v1543 = vld [vmem:[#allocation4 + $0x100] sm:$0xff]
        %v1544 = vld [vmem:[#allocation4 + $0x108] sm:$0xff]
        %v1545 = vld [vmem:[#allocation4 + $0x110] sm:$0xff]
        %v1546 = vld [vmem:[#allocation4 + $0x118] sm:$0xff]
        %v1547 = vld [vmem:[#allocation4 + $0x120] sm:$0xff]
        %v1548 = vld [vmem:[#allocation4 + $0x128] sm:$0xff]
        %v1549 = vld [vmem:[#allocation4 + $0x130] sm:$0xff]
        %v1550 = vld [vmem:[#allocation4 + $0x138] sm:$0xff]
        %v1551 = vld [vmem:[#allocation4 + $0x140] sm:$0xff]
        %v1552 = vld [vmem:[#allocation4 + $0x148] sm:$0xff]
        %v1553 = vld [vmem:[#allocation4 + $0x150] sm:$0xff]
        %v1554 = vld [vmem:[#allocation4 + $0x158] sm:$0xff]
        %v1555 = vld [vmem:[#allocation4 + $0x160] sm:$0xff]
        %v1556 = vld [vmem:[#allocation4 + $0x168] sm:$0xff]
        %v1557 = vld [vmem:[#allocation4 + $0x170] sm:$0xff]
        %v1558 = vld [vmem:[#allocation4 + $0x178] sm:$0xff]
        %1560 = vset.pattern.permute.xlu0 0
        %1561 = vperm.xlu0 %1560, %v1511
        %v1562 = vpop.permute.xlu0 %1561
        %1565 = vset.pattern.permute.xlu0 0
        %1566 = vperm.xlu0 %1565, %v1512
        %v1567 = vpop.permute.xlu0 %1566
        %1570 = vset.pattern.permute.xlu0 0
        %1571 = vperm.xlu0 %1570, %v1513
        %v1572 = vpop.permute.xlu0 %1571
        %1575 = vset.pattern.permute.xlu0 0
        %1576 = vperm.xlu0 %1575, %v1514
        %v1577 = vpop.permute.xlu0 %1576
        %1580 = vset.pattern.permute.xlu0 0
        %1581 = vperm.xlu0 %1580, %v1515
        %v1582 = vpop.permute.xlu0 %1581
        %1585 = vset.pattern.permute.xlu0 0
        %1586 = vperm.xlu0 %1585, %v1516
        %v1587 = vpop.permute.xlu0 %1586
        %1590 = vset.pattern.permute.xlu0 0
        %1591 = vperm.xlu0 %1590, %v1517
        %v1592 = vpop.permute.xlu0 %1591
        %1595 = vset.pattern.permute.xlu0 0
        %1596 = vperm.xlu0 %1595, %v1518
        %v1597 = vpop.permute.xlu0 %1596
        %1600 = vset.pattern.permute.xlu0 0
        %1601 = vperm.xlu0 %1600, %v1519
        %v1602 = vpop.permute.xlu0 %1601
        %1605 = vset.pattern.permute.xlu0 0
        %1606 = vperm.xlu0 %1605, %v1520
        %v1607 = vpop.permute.xlu0 %1606
        %1610 = vset.pattern.permute.xlu0 0
        %1611 = vperm.xlu0 %1610, %v1521
        %v1612 = vpop.permute.xlu0 %1611
        %1615 = vset.pattern.permute.xlu0 0
        %1616 = vperm.xlu0 %1615, %v1522
        %v1617 = vpop.permute.xlu0 %1616
        %1620 = vset.pattern.permute.xlu0 0
        %1621 = vperm.xlu0 %1620, %v1523
        %v1622 = vpop.permute.xlu0 %1621
        %1625 = vset.pattern.permute.xlu0 0
        %1626 = vperm.xlu0 %1625, %v1524
        %v1627 = vpop.permute.xlu0 %1626
        %1630 = vset.pattern.permute.xlu0 0
        %1631 = vperm.xlu0 %1630, %v1525
        %v1632 = vpop.permute.xlu0 %1631
        %1635 = vset.pattern.permute.xlu0 0
        %1636 = vperm.xlu0 %1635, %v1526
        %v1637 = vpop.permute.xlu0 %1636
        %1640 = vset.pattern.permute.xlu0 0
        %1641 = vperm.xlu0 %1640, %v1527
        %v1642 = vpop.permute.xlu0 %1641
        %1645 = vset.pattern.permute.xlu0 0
        %1646 = vperm.xlu0 %1645, %v1528
        %v1647 = vpop.permute.xlu0 %1646
        %1650 = vset.pattern.permute.xlu0 0
        %1651 = vperm.xlu0 %1650, %v1529
        %v1652 = vpop.permute.xlu0 %1651
        %1655 = vset.pattern.permute.xlu0 0
        %1656 = vperm.xlu0 %1655, %v1530
        %v1657 = vpop.permute.xlu0 %1656
        %1660 = vset.pattern.permute.xlu0 0
        %1661 = vperm.xlu0 %1660, %v1531
        %v1662 = vpop.permute.xlu0 %1661
        %1665 = vset.pattern.permute.xlu0 0
        %1666 = vperm.xlu0 %1665, %v1532
        %v1667 = vpop.permute.xlu0 %1666
        %1670 = vset.pattern.permute.xlu0 0
        %1671 = vperm.xlu0 %1670, %v1533
        %v1672 = vpop.permute.xlu0 %1671
        %1675 = vset.pattern.permute.xlu0 0
        %1676 = vperm.xlu0 %1675, %v1534
        %v1677 = vpop.permute.xlu0 %1676
        %1680 = vset.pattern.permute.xlu0 0
        %1681 = vperm.xlu0 %1680, %v1535
        %v1682 = vpop.permute.xlu0 %1681
        %1685 = vset.pattern.permute.xlu0 0
        %1686 = vperm.xlu0 %1685, %v1536
        %v1687 = vpop.permute.xlu0 %1686
        %1690 = vset.pattern.permute.xlu0 0
        %1691 = vperm.xlu0 %1690, %v1537
        %v1692 = vpop.permute.xlu0 %1691
        %1695 = vset.pattern.permute.xlu0 0
        %1696 = vperm.xlu0 %1695, %v1538
        %v1697 = vpop.permute.xlu0 %1696
        %1700 = vset.pattern.permute.xlu0 0
        %1701 = vperm.xlu0 %1700, %v1539
        %v1702 = vpop.permute.xlu0 %1701
        %1705 = vset.pattern.permute.xlu0 0
        %1706 = vperm.xlu0 %1705, %v1540
        %v1707 = vpop.permute.xlu0 %1706
        %1710 = vset.pattern.permute.xlu0 0
        %1711 = vperm.xlu0 %1710, %v1541
        %v1712 = vpop.permute.xlu0 %1711
        %1715 = vset.pattern.permute.xlu0 0
        %1716 = vperm.xlu0 %1715, %v1542
        %v1717 = vpop.permute.xlu0 %1716
        %1720 = vset.pattern.permute.xlu0 0
        %1721 = vperm.xlu0 %1720, %v1543
        %v1722 = vpop.permute.xlu0 %1721
        %1725 = vset.pattern.permute.xlu0 0
        %1726 = vperm.xlu0 %1725, %v1544
        %v1727 = vpop.permute.xlu0 %1726
        %1730 = vset.pattern.permute.xlu0 0
        %1731 = vperm.xlu0 %1730, %v1545
        %v1732 = vpop.permute.xlu0 %1731
        %1735 = vset.pattern.permute.xlu0 0
        %1736 = vperm.xlu0 %1735, %v1546
        %v1737 = vpop.permute.xlu0 %1736
        %1740 = vset.pattern.permute.xlu0 0
        %1741 = vperm.xlu0 %1740, %v1547
        %v1742 = vpop.permute.xlu0 %1741
        %1745 = vset.pattern.permute.xlu0 0
        %1746 = vperm.xlu0 %1745, %v1548
        %v1747 = vpop.permute.xlu0 %1746
        %1750 = vset.pattern.permute.xlu0 0
        %1751 = vperm.xlu0 %1750, %v1549
        %v1752 = vpop.permute.xlu0 %1751
        %1755 = vset.pattern.permute.xlu0 0
        %1756 = vperm.xlu0 %1755, %v1550
        %v1757 = vpop.permute.xlu0 %1756
        %1760 = vset.pattern.permute.xlu0 0
        %1761 = vperm.xlu0 %1760, %v1551
        %v1762 = vpop.permute.xlu0 %1761
        %1765 = vset.pattern.permute.xlu0 0
        %1766 = vperm.xlu0 %1765, %v1552
        %v1767 = vpop.permute.xlu0 %1766
        %1770 = vset.pattern.permute.xlu0 0
        %1771 = vperm.xlu0 %1770, %v1553
        %v1772 = vpop.permute.xlu0 %1771
        %1775 = vset.pattern.permute.xlu0 0
        %1776 = vperm.xlu0 %1775, %v1554
        %v1777 = vpop.permute.xlu0 %1776
        %1780 = vset.pattern.permute.xlu0 0
        %1781 = vperm.xlu0 %1780, %v1555
        %v1782 = vpop.permute.xlu0 %1781
        %1785 = vset.pattern.permute.xlu0 0
        %1786 = vperm.xlu0 %1785, %v1556
        %v1787 = vpop.permute.xlu0 %1786
        %1790 = vset.pattern.permute.xlu0 0
        %1791 = vperm.xlu0 %1790, %v1557
        %v1792 = vpop.permute.xlu0 %1791
        %1795 = vset.pattern.permute.xlu0 0
        %1796 = vperm.xlu0 %1795, %v1558
        %v1797 = vpop.permute.xlu0 %1796
        %v1799 = vsub.f32 %v1415, %v1562
        %v1800 = vsub.f32 %v1416, %v1562
        %v1801 = vsub.f32 %v1417, %v1567
        %v1802 = vsub.f32 %v1418, %v1567
        %v1803 = vsub.f32 %v1419, %v1572
        %v1804 = vsub.f32 %v1420, %v1572
        %v1805 = vsub.f32 %v1421, %v1577
        %v1806 = vsub.f32 %v1422, %v1577
        %v1807 = vsub.f32 %v1423, %v1582
        %v1808 = vsub.f32 %v1424, %v1582
        %v1809 = vsub.f32 %v1425, %v1587
        %v1810 = vsub.f32 %v1426, %v1587
        %v1811 = vsub.f32 %v1427, %v1592
        %v1812 = vsub.f32 %v1428, %v1592
        %v1813 = vsub.f32 %v1429, %v1597
        %v1814 = vsub.f32 %v1430, %v1597
        %v1815 = vsub.f32 %v1431, %v1602
        %v1816 = vsub.f32 %v1432, %v1602
        %v1817 = vsub.f32 %v1433, %v1607
        %v1818 = vsub.f32 %v1434, %v1607
        %v1819 = vsub.f32 %v1435, %v1612
        %v1820 = vsub.f32 %v1436, %v1612
        %v1821 = vsub.f32 %v1437, %v1617
        %v1822 = vsub.f32 %v1438, %v1617
        %v1823 = vsub.f32 %v1439, %v1622
        %v1824 = vsub.f32 %v1440, %v1622
        %v1825 = vsub.f32 %v1441, %v1627
        %v1826 = vsub.f32 %v1442, %v1627
        %v1827 = vsub.f32 %v1443, %v1632
        %v1828 = vsub.f32 %v1444, %v1632
        %v1829 = vsub.f32 %v1445, %v1637
        %v1830 = vsub.f32 %v1446, %v1637
        %v1831 = vsub.f32 %v1447, %v1642
        %v1832 = vsub.f32 %v1448, %v1642
        %v1833 = vsub.f32 %v1449, %v1647
        %v1834 = vsub.f32 %v1450, %v1647
        %v1835 = vsub.f32 %v1451, %v1652
        %v1836 = vsub.f32 %v1452, %v1652
        %v1837 = vsub.f32 %v1453, %v1657
        %v1838 = vsub.f32 %v1454, %v1657
        %v1839 = vsub.f32 %v1455, %v1662
        %v1840 = vsub.f32 %v1456, %v1662
        %v1841 = vsub.f32 %v1457, %v1667
        %v1842 = vsub.f32 %v1458, %v1667
        %v1843 = vsub.f32 %v1459, %v1672
        %v1844 = vsub.f32 %v1460, %v1672
        %v1845 = vsub.f32 %v1461, %v1677
        %v1846 = vsub.f32 %v1462, %v1677
        %v1847 = vsub.f32 %v1463, %v1682
        %v1848 = vsub.f32 %v1464, %v1682
        %v1849 = vsub.f32 %v1465, %v1687
        %v1850 = vsub.f32 %v1466, %v1687
        %v1851 = vsub.f32 %v1467, %v1692
        %v1852 = vsub.f32 %v1468, %v1692
        %v1853 = vsub.f32 %v1469, %v1697
        %v1854 = vsub.f32 %v1470, %v1697
        %v1855 = vsub.f32 %v1471, %v1702
        %v1856 = vsub.f32 %v1472, %v1702
        %v1857 = vsub.f32 %v1473, %v1707
        %v1858 = vsub.f32 %v1474, %v1707
        %v1859 = vsub.f32 %v1475, %v1712
        %v1860 = vsub.f32 %v1476, %v1712
        %v1861 = vsub.f32 %v1477, %v1717
        %v1862 = vsub.f32 %v1478, %v1717
        %v1863 = vsub.f32 %v1479, %v1722
        %v1864 = vsub.f32 %v1480, %v1722
        %v1865 = vsub.f32 %v1481, %v1727
        %v1866 = vsub.f32 %v1482, %v1727
        %v1867 = vsub.f32 %v1483, %v1732
        %v1868 = vsub.f32 %v1484, %v1732
        %v1869 = vsub.f32 %v1485, %v1737
        %v1870 = vsub.f32 %v1486, %v1737
        %v1871 = vsub.f32 %v1487, %v1742
        %v1872 = vsub.f32 %v1488, %v1742
        %v1873 = vsub.f32 %v1489, %v1747
        %v1874 = vsub.f32 %v1490, %v1747
        %v1875 = vsub.f32 %v1491, %v1752
        %v1876 = vsub.f32 %v1492, %v1752
        %v1877 = vsub.f32 %v1493, %v1757
        %v1878 = vsub.f32 %v1494, %v1757
        %v1879 = vsub.f32 %v1495, %v1762
        %v1880 = vsub.f32 %v1496, %v1762
        %v1881 = vsub.f32 %v1497, %v1767
        %v1882 = vsub.f32 %v1498, %v1767
        %v1883 = vsub.f32 %v1499, %v1772
        %v1884 = vsub.f32 %v1500, %v1772
        %v1885 = vsub.f32 %v1501, %v1777
        %v1886 = vsub.f32 %v1502, %v1777
        %v1887 = vsub.f32 %v1503, %v1782
        %v1888 = vsub.f32 %v1504, %v1782
        %v1889 = vsub.f32 %v1505, %v1787
        %v1890 = vsub.f32 %v1506, %v1787
        %v1891 = vsub.f32 %v1507, %v1792
        %v1892 = vsub.f32 %v1508, %v1792
        %v1893 = vsub.f32 %v1509, %v1797
        %v1894 = vsub.f32 %v1510, %v1797
        %v1895 = vand.u32 2147483647, %v1013
        %v1896 = vand.u32 2147483647, %v1014
        %v1897 = vand.u32 2147483647, %v1015
        %v1898 = vand.u32 2147483647, %v1016
        %v1899 = vand.u32 2147483647, %v1017
        %v1900 = vand.u32 2147483647, %v1018
        %v1901 = vand.u32 2147483647, %v1019
        %v1902 = vand.u32 2147483647, %v1020
        %v1903 = vand.u32 2147483647, %v1021
        %v1904 = vand.u32 2147483647, %v1022
        %v1905 = vand.u32 2147483647, %v1023
        %v1906 = vand.u32 2147483647, %v1024
        %v1907 = vand.u32 2147483647, %v1025
        %v1908 = vand.u32 2147483647, %v1026
        %v1909 = vand.u32 2147483647, %v1027
        %v1910 = vand.u32 2147483647, %v1028
        %v1911 = vand.u32 2147483647, %v1029
        %v1912 = vand.u32 2147483647, %v1030
        %v1913 = vand.u32 2147483647, %v1031
        %v1914 = vand.u32 2147483647, %v1032
        %v1915 = vand.u32 2147483647, %v1033
        %v1916 = vand.u32 2147483647, %v1034
        %v1917 = vand.u32 2147483647, %v1035
        %v1918 = vand.u32 2147483647, %v1036
        %v1919 = vand.u32 2147483647, %v1037
        %v1920 = vand.u32 2147483647, %v1038
        %v1921 = vand.u32 2147483647, %v1039
        %v1922 = vand.u32 2147483647, %v1040
        %v1923 = vand.u32 2147483647, %v1041
        %v1924 = vand.u32 2147483647, %v1042
        %v1925 = vand.u32 2147483647, %v1043
        %v1926 = vand.u32 2147483647, %v1044
        %v1927 = vand.u32 2147483647, %v1045
        %v1928 = vand.u32 2147483647, %v1046
        %v1929 = vand.u32 2147483647, %v1047
        %v1930 = vand.u32 2147483647, %v1048
        %v1931 = vand.u32 2147483647, %v1049
        %v1932 = vand.u32 2147483647, %v1050
        %v1933 = vand.u32 2147483647, %v1051
        %v1934 = vand.u32 2147483647, %v1052
        %v1935 = vand.u32 2147483647, %v1053
        %v1936 = vand.u32 2147483647, %v1054
        %v1937 = vand.u32 2147483647, %v1055
        %v1938 = vand.u32 2147483647, %v1056
        %v1939 = vand.u32 2147483647, %v1057
        %v1940 = vand.u32 2147483647, %v1058
        %v1941 = vand.u32 2147483647, %v1059
        %v1942 = vand.u32 2147483647, %v1060
        %v1943 = vand.u32 2147483647, %v1061
        %v1944 = vand.u32 2147483647, %v1062
        %v1945 = vand.u32 2147483647, %v1063
        %v1946 = vand.u32 2147483647, %v1064
        %v1947 = vand.u32 2147483647, %v1065
        %v1948 = vand.u32 2147483647, %v1066
        %v1949 = vand.u32 2147483647, %v1067
        %v1950 = vand.u32 2147483647, %v1068
        %v1951 = vand.u32 2147483647, %v1069
        %v1952 = vand.u32 2147483647, %v1070
        %v1953 = vand.u32 2147483647, %v1071
        %v1954 = vand.u32 2147483647, %v1072
        %v1955 = vand.u32 2147483647, %v1073
        %v1956 = vand.u32 2147483647, %v1074
        %v1957 = vand.u32 2147483647, %v1075
        %v1958 = vand.u32 2147483647, %v1076
        %v1959 = vand.u32 2147483647, %v1077
        %v1960 = vand.u32 2147483647, %v1078
        %v1961 = vand.u32 2147483647, %v1079
        %v1962 = vand.u32 2147483647, %v1080
        %v1963 = vand.u32 2147483647, %v1081
        %v1964 = vand.u32 2147483647, %v1082
        %v1965 = vand.u32 2147483647, %v1083
        %v1966 = vand.u32 2147483647, %v1084
        %v1967 = vand.u32 2147483647, %v1085
        %v1968 = vand.u32 2147483647, %v1086
        %v1969 = vand.u32 2147483647, %v1087
        %v1970 = vand.u32 2147483647, %v1088
        %v1971 = vand.u32 2147483647, %v1089
        %v1972 = vand.u32 2147483647, %v1090
        %v1973 = vand.u32 2147483647, %v1091
        %v1974 = vand.u32 2147483647, %v1092
        %v1975 = vand.u32 2147483647, %v1093
        %v1976 = vand.u32 2147483647, %v1094
        %v1977 = vand.u32 2147483647, %v1095
        %v1978 = vand.u32 2147483647, %v1096
        %v1979 = vand.u32 2147483647, %v1097
        %v1980 = vand.u32 2147483647, %v1098
        %v1981 = vand.u32 2147483647, %v1099
        %v1982 = vand.u32 2147483647, %v1100
        %v1983 = vand.u32 2147483647, %v1101
        %v1984 = vand.u32 2147483647, %v1102
        %v1985 = vand.u32 2147483647, %v1103
        %v1986 = vand.u32 2147483647, %v1104
        %v1987 = vand.u32 2147483647, %v1105
        %v1988 = vand.u32 2147483647, %v1106
        %v1989 = vand.u32 2147483647, %v1107
        %v1990 = vand.u32 2147483647, %v1108
        %v1991 = vsub.f32 1.0, %v1895
        %v1992 = vsub.f32 1.0, %v1896
        %v1993 = vsub.f32 1.0, %v1897
        %v1994 = vsub.f32 1.0, %v1898
        %v1995 = vsub.f32 1.0, %v1899
        %v1996 = vsub.f32 1.0, %v1900
        %v1997 = vsub.f32 1.0, %v1901
        %v1998 = vsub.f32 1.0, %v1902
        %v1999 = vsub.f32 1.0, %v1903
        %v2000 = vsub.f32 1.0, %v1904
        %v2001 = vsub.f32 1.0, %v1905
        %v2002 = vsub.f32 1.0, %v1906
        %v2003 = vsub.f32 1.0, %v1907
        %v2004 = vsub.f32 1.0, %v1908
        %v2005 = vsub.f32 1.0, %v1909
        %v2006 = vsub.f32 1.0, %v1910
        %v2007 = vsub.f32 1.0, %v1911
        %v2008 = vsub.f32 1.0, %v1912
        %v2009 = vsub.f32 1.0, %v1913
        %v2010 = vsub.f32 1.0, %v1914
        %v2011 = vsub.f32 1.0, %v1915
        %v2012 = vsub.f32 1.0, %v1916
        %v2013 = vsub.f32 1.0, %v1917
        %v2014 = vsub.f32 1.0, %v1918
        %v2015 = vsub.f32 1.0, %v1919
        %v2016 = vsub.f32 1.0, %v1920
        %v2017 = vsub.f32 1.0, %v1921
        %v2018 = vsub.f32 1.0, %v1922
        %v2019 = vsub.f32 1.0, %v1923
        %v2020 = vsub.f32 1.0, %v1924
        %v2021 = vsub.f32 1.0, %v1925
        %v2022 = vsub.f32 1.0, %v1926
        %v2023 = vsub.f32 1.0, %v1927
        %v2024 = vsub.f32 1.0, %v1928
        %v2025 = vsub.f32 1.0, %v1929
        %v2026 = vsub.f32 1.0, %v1930
        %v2027 = vsub.f32 1.0, %v1931
        %v2028 = vsub.f32 1.0, %v1932
        %v2029 = vsub.f32 1.0, %v1933
        %v2030 = vsub.f32 1.0, %v1934
        %v2031 = vsub.f32 1.0, %v1935
        %v2032 = vsub.f32 1.0, %v1936
        %v2033 = vsub.f32 1.0, %v1937
        %v2034 = vsub.f32 1.0, %v1938
        %v2035 = vsub.f32 1.0, %v1939
        %v2036 = vsub.f32 1.0, %v1940
        %v2037 = vsub.f32 1.0, %v1941
        %v2038 = vsub.f32 1.0, %v1942
        %v2039 = vsub.f32 1.0, %v1943
        %v2040 = vsub.f32 1.0, %v1944
        %v2041 = vsub.f32 1.0, %v1945
        %v2042 = vsub.f32 1.0, %v1946
        %v2043 = vsub.f32 1.0, %v1947
        %v2044 = vsub.f32 1.0, %v1948
        %v2045 = vsub.f32 1.0, %v1949
        %v2046 = vsub.f32 1.0, %v1950
        %v2047 = vsub.f32 1.0, %v1951
        %v2048 = vsub.f32 1.0, %v1952
        %v2049 = vsub.f32 1.0, %v1953
        %v2050 = vsub.f32 1.0, %v1954
        %v2051 = vsub.f32 1.0, %v1955
        %v2052 = vsub.f32 1.0, %v1956
        %v2053 = vsub.f32 1.0, %v1957
        %v2054 = vsub.f32 1.0, %v1958
        %v2055 = vsub.f32 1.0, %v1959
        %v2056 = vsub.f32 1.0, %v1960
        %v2057 = vsub.f32 1.0, %v1961
        %v2058 = vsub.f32 1.0, %v1962
        %v2059 = vsub.f32 1.0, %v1963
        %v2060 = vsub.f32 1.0, %v1964
        %v2061 = vsub.f32 1.0, %v1965
        %v2062 = vsub.f32 1.0, %v1966
        %v2063 = vsub.f32 1.0, %v1967
        %v2064 = vsub.f32 1.0, %v1968
        %v2065 = vsub.f32 1.0, %v1969
        %v2066 = vsub.f32 1.0, %v1970
        %v2067 = vsub.f32 1.0, %v1971
        %v2068 = vsub.f32 1.0, %v1972
        %v2069 = vsub.f32 1.0, %v1973
        %v2070 = vsub.f32 1.0, %v1974
        %v2071 = vsub.f32 1.0, %v1975
        %v2072 = vsub.f32 1.0, %v1976
        %v2073 = vsub.f32 1.0, %v1977
        %v2074 = vsub.f32 1.0, %v1978
        %v2075 = vsub.f32 1.0, %v1979
        %v2076 = vsub.f32 1.0, %v1980
        %v2077 = vsub.f32 1.0, %v1981
        %v2078 = vsub.f32 1.0, %v1982
        %v2079 = vsub.f32 1.0, %v1983
        %v2080 = vsub.f32 1.0, %v1984
        %v2081 = vsub.f32 1.0, %v1985
        %v2082 = vsub.f32 1.0, %v1986
        %v2083 = vsub.f32 1.0, %v1987
        %v2084 = vsub.f32 1.0, %v1988
        %v2085 = vsub.f32 1.0, %v1989
        %v2086 = vsub.f32 1.0, %v1990
        %v2087 = vmax.f32 %v1991, 0.0
        %v2088 = vmax.f32 %v1992, 0.0
        %v2089 = vmax.f32 %v1993, 0.0
        %v2090 = vmax.f32 %v1994, 0.0
        %v2091 = vmax.f32 %v1995, 0.0
        %v2092 = vmax.f32 %v1996, 0.0
        %v2093 = vmax.f32 %v1997, 0.0
        %v2094 = vmax.f32 %v1998, 0.0
        %v2095 = vmax.f32 %v1999, 0.0
        %v2096 = vmax.f32 %v2000, 0.0
        %v2097 = vmax.f32 %v2001, 0.0
        %v2098 = vmax.f32 %v2002, 0.0
        %v2099 = vmax.f32 %v2003, 0.0
        %v2100 = vmax.f32 %v2004, 0.0
        %v2101 = vmax.f32 %v2005, 0.0
        %v2102 = vmax.f32 %v2006, 0.0
        %v2103 = vmax.f32 %v2007, 0.0
        %v2104 = vmax.f32 %v2008, 0.0
        %v2105 = vmax.f32 %v2009, 0.0
        %v2106 = vmax.f32 %v2010, 0.0
        %v2107 = vmax.f32 %v2011, 0.0
        %v2108 = vmax.f32 %v2012, 0.0
        %v2109 = vmax.f32 %v2013, 0.0
        %v2110 = vmax.f32 %v2014, 0.0
        %v2111 = vmax.f32 %v2015, 0.0
        %v2112 = vmax.f32 %v2016, 0.0
        %v2113 = vmax.f32 %v2017, 0.0
        %v2114 = vmax.f32 %v2018, 0.0
        %v2115 = vmax.f32 %v2019, 0.0
        %v2116 = vmax.f32 %v2020, 0.0
        %v2117 = vmax.f32 %v2021, 0.0
        %v2118 = vmax.f32 %v2022, 0.0
        %v2119 = vmax.f32 %v2023, 0.0
        %v2120 = vmax.f32 %v2024, 0.0
        %v2121 = vmax.f32 %v2025, 0.0
        %v2122 = vmax.f32 %v2026, 0.0
        %v2123 = vmax.f32 %v2027, 0.0
        %v2124 = vmax.f32 %v2028, 0.0
        %v2125 = vmax.f32 %v2029, 0.0
        %v2126 = vmax.f32 %v2030, 0.0
        %v2127 = vmax.f32 %v2031, 0.0
        %v2128 = vmax.f32 %v2032, 0.0
        %v2129 = vmax.f32 %v2033, 0.0
        %v2130 = vmax.f32 %v2034, 0.0
        %v2131 = vmax.f32 %v2035, 0.0
        %v2132 = vmax.f32 %v2036, 0.0
        %v2133 = vmax.f32 %v2037, 0.0
        %v2134 = vmax.f32 %v2038, 0.0
        %v2135 = vmax.f32 %v2039, 0.0
        %v2136 = vmax.f32 %v2040, 0.0
        %v2137 = vmax.f32 %v2041, 0.0
        %v2138 = vmax.f32 %v2042, 0.0
        %v2139 = vmax.f32 %v2043, 0.0
        %v2140 = vmax.f32 %v2044, 0.0
        %v2141 = vmax.f32 %v2045, 0.0
        %v2142 = vmax.f32 %v2046, 0.0
        %v2143 = vmax.f32 %v2047, 0.0
        %v2144 = vmax.f32 %v2048, 0.0
        %v2145 = vmax.f32 %v2049, 0.0
        %v2146 = vmax.f32 %v2050, 0.0
        %v2147 = vmax.f32 %v2051, 0.0
        %v2148 = vmax.f32 %v2052, 0.0
        %v2149 = vmax.f32 %v2053, 0.0
        %v2150 = vmax.f32 %v2054, 0.0
        %v2151 = vmax.f32 %v2055, 0.0
        %v2152 = vmax.f32 %v2056, 0.0
        %v2153 = vmax.f32 %v2057, 0.0
        %v2154 = vmax.f32 %v2058, 0.0
        %v2155 = vmax.f32 %v2059, 0.0
        %v2156 = vmax.f32 %v2060, 0.0
        %v2157 = vmax.f32 %v2061, 0.0
        %v2158 = vmax.f32 %v2062, 0.0
        %v2159 = vmax.f32 %v2063, 0.0
        %v2160 = vmax.f32 %v2064, 0.0
        %v2161 = vmax.f32 %v2065, 0.0
        %v2162 = vmax.f32 %v2066, 0.0
        %v2163 = vmax.f32 %v2067, 0.0
        %v2164 = vmax.f32 %v2068, 0.0
        %v2165 = vmax.f32 %v2069, 0.0
        %v2166 = vmax.f32 %v2070, 0.0
        %v2167 = vmax.f32 %v2071, 0.0
        %v2168 = vmax.f32 %v2072, 0.0
        %v2169 = vmax.f32 %v2073, 0.0
        %v2170 = vmax.f32 %v2074, 0.0
        %v2171 = vmax.f32 %v2075, 0.0
        %v2172 = vmax.f32 %v2076, 0.0
        %v2173 = vmax.f32 %v2077, 0.0
        %v2174 = vmax.f32 %v2078, 0.0
        %v2175 = vmax.f32 %v2079, 0.0
        %v2176 = vmax.f32 %v2080, 0.0
        %v2177 = vmax.f32 %v2081, 0.0
        %v2178 = vmax.f32 %v2082, 0.0
        %v2179 = vmax.f32 %v2083, 0.0
        %v2180 = vmax.f32 %v2084, 0.0
        %v2181 = vmax.f32 %v2085, 0.0
        %v2182 = vmax.f32 %v2086, 0.0
        %v2183 = vand.u32 2147483647, %v1799
        %v2184 = vand.u32 2147483647, %v1800
        %v2185 = vand.u32 2147483647, %v1801
        %v2186 = vand.u32 2147483647, %v1802
        %v2187 = vand.u32 2147483647, %v1803
        %v2188 = vand.u32 2147483647, %v1804
        %v2189 = vand.u32 2147483647, %v1805
        %v2190 = vand.u32 2147483647, %v1806
        %v2191 = vand.u32 2147483647, %v1807
        %v2192 = vand.u32 2147483647, %v1808
        %v2193 = vand.u32 2147483647, %v1809
        %v2194 = vand.u32 2147483647, %v1810
        %v2195 = vand.u32 2147483647, %v1811
        %v2196 = vand.u32 2147483647, %v1812
        %v2197 = vand.u32 2147483647, %v1813
        %v2198 = vand.u32 2147483647, %v1814
        %v2199 = vand.u32 2147483647, %v1815
        %v2200 = vand.u32 2147483647, %v1816
        %v2201 = vand.u32 2147483647, %v1817
        %v2202 = vand.u32 2147483647, %v1818
        %v2203 = vand.u32 2147483647, %v1819
        %v2204 = vand.u32 2147483647, %v1820
        %v2205 = vand.u32 2147483647, %v1821
        %v2206 = vand.u32 2147483647, %v1822
        %v2207 = vand.u32 2147483647, %v1823
        %v2208 = vand.u32 2147483647, %v1824
        %v2209 = vand.u32 2147483647, %v1825
        %v2210 = vand.u32 2147483647, %v1826
        %v2211 = vand.u32 2147483647, %v1827
        %v2212 = vand.u32 2147483647, %v1828
        %v2213 = vand.u32 2147483647, %v1829
        %v2214 = vand.u32 2147483647, %v1830
        %v2215 = vand.u32 2147483647, %v1831
        %v2216 = vand.u32 2147483647, %v1832
        %v2217 = vand.u32 2147483647, %v1833
        %v2218 = vand.u32 2147483647, %v1834
        %v2219 = vand.u32 2147483647, %v1835
        %v2220 = vand.u32 2147483647, %v1836
        %v2221 = vand.u32 2147483647, %v1837
        %v2222 = vand.u32 2147483647, %v1838
        %v2223 = vand.u32 2147483647, %v1839
        %v2224 = vand.u32 2147483647, %v1840
        %v2225 = vand.u32 2147483647, %v1841
        %v2226 = vand.u32 2147483647, %v1842
        %v2227 = vand.u32 2147483647, %v1843
        %v2228 = vand.u32 2147483647, %v1844
        %v2229 = vand.u32 2147483647, %v1845
        %v2230 = vand.u32 2147483647, %v1846
        %v2231 = vand.u32 2147483647, %v1847
        %v2232 = vand.u32 2147483647, %v1848
        %v2233 = vand.u32 2147483647, %v1849
        %v2234 = vand.u32 2147483647, %v1850
        %v2235 = vand.u32 2147483647, %v1851
        %v2236 = vand.u32 2147483647, %v1852
        %v2237 = vand.u32 2147483647, %v1853
        %v2238 = vand.u32 2147483647, %v1854
        %v2239 = vand.u32 2147483647, %v1855
        %v2240 = vand.u32 2147483647, %v1856
        %v2241 = vand.u32 2147483647, %v1857
        %v2242 = vand.u32 2147483647, %v1858
        %v2243 = vand.u32 2147483647, %v1859
        %v2244 = vand.u32 2147483647, %v1860
        %v2245 = vand.u32 2147483647, %v1861
        %v2246 = vand.u32 2147483647, %v1862
        %v2247 = vand.u32 2147483647, %v1863
        %v2248 = vand.u32 2147483647, %v1864
        %v2249 = vand.u32 2147483647, %v1865
        %v2250 = vand.u32 2147483647, %v1866
        %v2251 = vand.u32 2147483647, %v1867
        %v2252 = vand.u32 2147483647, %v1868
        %v2253 = vand.u32 2147483647, %v1869
        %v2254 = vand.u32 2147483647, %v1870
        %v2255 = vand.u32 2147483647, %v1871
        %v2256 = vand.u32 2147483647, %v1872
        %v2257 = vand.u32 2147483647, %v1873
        %v2258 = vand.u32 2147483647, %v1874
        %v2259 = vand.u32 2147483647, %v1875
        %v2260 = vand.u32 2147483647, %v1876
        %v2261 = vand.u32 2147483647, %v1877
        %v2262 = vand.u32 2147483647, %v1878
        %v2263 = vand.u32 2147483647, %v1879
        %v2264 = vand.u32 2147483647, %v1880
        %v2265 = vand.u32 2147483647, %v1881
        %v2266 = vand.u32 2147483647, %v1882
        %v2267 = vand.u32 2147483647, %v1883
        %v2268 = vand.u32 2147483647, %v1884
        %v2269 = vand.u32 2147483647, %v1885
        %v2270 = vand.u32 2147483647, %v1886
        %v2271 = vand.u32 2147483647, %v1887
        %v2272 = vand.u32 2147483647, %v1888
        %v2273 = vand.u32 2147483647, %v1889
        %v2274 = vand.u32 2147483647, %v1890
        %v2275 = vand.u32 2147483647, %v1891
        %v2276 = vand.u32 2147483647, %v1892
        %v2277 = vand.u32 2147483647, %v1893
        %v2278 = vand.u32 2147483647, %v1894
        %v2279 = vsub.f32 1.0, %v2183
        %v2280 = vsub.f32 1.0, %v2184
        %v2281 = vsub.f32 1.0, %v2185
        %v2282 = vsub.f32 1.0, %v2186
        %v2283 = vsub.f32 1.0, %v2187
        %v2284 = vsub.f32 1.0, %v2188
        %v2285 = vsub.f32 1.0, %v2189
        %v2286 = vsub.f32 1.0, %v2190
        %v2287 = vsub.f32 1.0, %v2191
        %v2288 = vsub.f32 1.0, %v2192
        %v2289 = vsub.f32 1.0, %v2193
        %v2290 = vsub.f32 1.0, %v2194
        %v2291 = vsub.f32 1.0, %v2195
        %v2292 = vsub.f32 1.0, %v2196
        %v2293 = vsub.f32 1.0, %v2197
        %v2294 = vsub.f32 1.0, %v2198
        %v2295 = vsub.f32 1.0, %v2199
        %v2296 = vsub.f32 1.0, %v2200
        %v2297 = vsub.f32 1.0, %v2201
        %v2298 = vsub.f32 1.0, %v2202
        %v2299 = vsub.f32 1.0, %v2203
        %v2300 = vsub.f32 1.0, %v2204
        %v2301 = vsub.f32 1.0, %v2205
        %v2302 = vsub.f32 1.0, %v2206
        %v2303 = vsub.f32 1.0, %v2207
        %v2304 = vsub.f32 1.0, %v2208
        %v2305 = vsub.f32 1.0, %v2209
        %v2306 = vsub.f32 1.0, %v2210
        %v2307 = vsub.f32 1.0, %v2211
        %v2308 = vsub.f32 1.0, %v2212
        %v2309 = vsub.f32 1.0, %v2213
        %v2310 = vsub.f32 1.0, %v2214
        %v2311 = vsub.f32 1.0, %v2215
        %v2312 = vsub.f32 1.0, %v2216
        %v2313 = vsub.f32 1.0, %v2217
        %v2314 = vsub.f32 1.0, %v2218
        %v2315 = vsub.f32 1.0, %v2219
        %v2316 = vsub.f32 1.0, %v2220
        %v2317 = vsub.f32 1.0, %v2221
        %v2318 = vsub.f32 1.0, %v2222
        %v2319 = vsub.f32 1.0, %v2223
        %v2320 = vsub.f32 1.0, %v2224
        %v2321 = vsub.f32 1.0, %v2225
        %v2322 = vsub.f32 1.0, %v2226
        %v2323 = vsub.f32 1.0, %v2227
        %v2324 = vsub.f32 1.0, %v2228
        %v2325 = vsub.f32 1.0, %v2229
        %v2326 = vsub.f32 1.0, %v2230
        %v2327 = vsub.f32 1.0, %v2231
        %v2328 = vsub.f32 1.0, %v2232
        %v2329 = vsub.f32 1.0, %v2233
        %v2330 = vsub.f32 1.0, %v2234
        %v2331 = vsub.f32 1.0, %v2235
        %v2332 = vsub.f32 1.0, %v2236
        %v2333 = vsub.f32 1.0, %v2237
        %v2334 = vsub.f32 1.0, %v2238
        %v2335 = vsub.f32 1.0, %v2239
        %v2336 = vsub.f32 1.0, %v2240
        %v2337 = vsub.f32 1.0, %v2241
        %v2338 = vsub.f32 1.0, %v2242
        %v2339 = vsub.f32 1.0, %v2243
        %v2340 = vsub.f32 1.0, %v2244
        %v2341 = vsub.f32 1.0, %v2245
        %v2342 = vsub.f32 1.0, %v2246
        %v2343 = vsub.f32 1.0, %v2247
        %v2344 = vsub.f32 1.0, %v2248
        %v2345 = vsub.f32 1.0, %v2249
        %v2346 = vsub.f32 1.0, %v2250
        %v2347 = vsub.f32 1.0, %v2251
        %v2348 = vsub.f32 1.0, %v2252
        %v2349 = vsub.f32 1.0, %v2253
        %v2350 = vsub.f32 1.0, %v2254
        %v2351 = vsub.f32 1.0, %v2255
        %v2352 = vsub.f32 1.0, %v2256
        %v2353 = vsub.f32 1.0, %v2257
        %v2354 = vsub.f32 1.0, %v2258
        %v2355 = vsub.f32 1.0, %v2259
        %v2356 = vsub.f32 1.0, %v2260
        %v2357 = vsub.f32 1.0, %v2261
        %v2358 = vsub.f32 1.0, %v2262
        %v2359 = vsub.f32 1.0, %v2263
        %v2360 = vsub.f32 1.0, %v2264
        %v2361 = vsub.f32 1.0, %v2265
        %v2362 = vsub.f32 1.0, %v2266
        %v2363 = vsub.f32 1.0, %v2267
        %v2364 = vsub.f32 1.0, %v2268
        %v2365 = vsub.f32 1.0, %v2269
        %v2366 = vsub.f32 1.0, %v2270
        %v2367 = vsub.f32 1.0, %v2271
        %v2368 = vsub.f32 1.0, %v2272
        %v2369 = vsub.f32 1.0, %v2273
        %v2370 = vsub.f32 1.0, %v2274
        %v2371 = vsub.f32 1.0, %v2275
        %v2372 = vsub.f32 1.0, %v2276
        %v2373 = vsub.f32 1.0, %v2277
        %v2374 = vsub.f32 1.0, %v2278
        %v2375 = vmax.f32 %v2279, 0.0
        %v2376 = vmax.f32 %v2280, 0.0
        %v2377 = vmax.f32 %v2281, 0.0
        %v2378 = vmax.f32 %v2282, 0.0
        %v2379 = vmax.f32 %v2283, 0.0
        %v2380 = vmax.f32 %v2284, 0.0
        %v2381 = vmax.f32 %v2285, 0.0
        %v2382 = vmax.f32 %v2286, 0.0
        %v2383 = vmax.f32 %v2287, 0.0
        %v2384 = vmax.f32 %v2288, 0.0
        %v2385 = vmax.f32 %v2289, 0.0
        %v2386 = vmax.f32 %v2290, 0.0
        %v2387 = vmax.f32 %v2291, 0.0
        %v2388 = vmax.f32 %v2292, 0.0
        %v2389 = vmax.f32 %v2293, 0.0
        %v2390 = vmax.f32 %v2294, 0.0
        %v2391 = vmax.f32 %v2295, 0.0
        %v2392 = vmax.f32 %v2296, 0.0
        %v2393 = vmax.f32 %v2297, 0.0
        %v2394 = vmax.f32 %v2298, 0.0
        %v2395 = vmax.f32 %v2299, 0.0
        %v2396 = vmax.f32 %v2300, 0.0
        %v2397 = vmax.f32 %v2301, 0.0
        %v2398 = vmax.f32 %v2302, 0.0
        %v2399 = vmax.f32 %v2303, 0.0
        %v2400 = vmax.f32 %v2304, 0.0
        %v2401 = vmax.f32 %v2305, 0.0
        %v2402 = vmax.f32 %v2306, 0.0
        %v2403 = vmax.f32 %v2307, 0.0
        %v2404 = vmax.f32 %v2308, 0.0
        %v2405 = vmax.f32 %v2309, 0.0
        %v2406 = vmax.f32 %v2310, 0.0
        %v2407 = vmax.f32 %v2311, 0.0
        %v2408 = vmax.f32 %v2312, 0.0
        %v2409 = vmax.f32 %v2313, 0.0
        %v2410 = vmax.f32 %v2314, 0.0
        %v2411 = vmax.f32 %v2315, 0.0
        %v2412 = vmax.f32 %v2316, 0.0
        %v2413 = vmax.f32 %v2317, 0.0
        %v2414 = vmax.f32 %v2318, 0.0
        %v2415 = vmax.f32 %v2319, 0.0
        %v2416 = vmax.f32 %v2320, 0.0
        %v2417 = vmax.f32 %v2321, 0.0
        %v2418 = vmax.f32 %v2322, 0.0
        %v2419 = vmax.f32 %v2323, 0.0
        %v2420 = vmax.f32 %v2324, 0.0
        %v2421 = vmax.f32 %v2325, 0.0
        %v2422 = vmax.f32 %v2326, 0.0
        %v2423 = vmax.f32 %v2327, 0.0
        %v2424 = vmax.f32 %v2328, 0.0
        %v2425 = vmax.f32 %v2329, 0.0
        %v2426 = vmax.f32 %v2330, 0.0
        %v2427 = vmax.f32 %v2331, 0.0
        %v2428 = vmax.f32 %v2332, 0.0
        %v2429 = vmax.f32 %v2333, 0.0
        %v2430 = vmax.f32 %v2334, 0.0
        %v2431 = vmax.f32 %v2335, 0.0
        %v2432 = vmax.f32 %v2336, 0.0
        %v2433 = vmax.f32 %v2337, 0.0
        %v2434 = vmax.f32 %v2338, 0.0
        %v2435 = vmax.f32 %v2339, 0.0
        %v2436 = vmax.f32 %v2340, 0.0
        %v2437 = vmax.f32 %v2341, 0.0
        %v2438 = vmax.f32 %v2342, 0.0
        %v2439 = vmax.f32 %v2343, 0.0
        %v2440 = vmax.f32 %v2344, 0.0
        %v2441 = vmax.f32 %v2345, 0.0
        %v2442 = vmax.f32 %v2346, 0.0
        %v2443 = vmax.f32 %v2347, 0.0
        %v2444 = vmax.f32 %v2348, 0.0
        %v2445 = vmax.f32 %v2349, 0.0
        %v2446 = vmax.f32 %v2350, 0.0
        %v2447 = vmax.f32 %v2351, 0.0
        %v2448 = vmax.f32 %v2352, 0.0
        %v2449 = vmax.f32 %v2353, 0.0
        %v2450 = vmax.f32 %v2354, 0.0
        %v2451 = vmax.f32 %v2355, 0.0
        %v2452 = vmax.f32 %v2356, 0.0
        %v2453 = vmax.f32 %v2357, 0.0
        %v2454 = vmax.f32 %v2358, 0.0
        %v2455 = vmax.f32 %v2359, 0.0
        %v2456 = vmax.f32 %v2360, 0.0
        %v2457 = vmax.f32 %v2361, 0.0
        %v2458 = vmax.f32 %v2362, 0.0
        %v2459 = vmax.f32 %v2363, 0.0
        %v2460 = vmax.f32 %v2364, 0.0
        %v2461 = vmax.f32 %v2365, 0.0
        %v2462 = vmax.f32 %v2366, 0.0
        %v2463 = vmax.f32 %v2367, 0.0
        %v2464 = vmax.f32 %v2368, 0.0
        %v2465 = vmax.f32 %v2369, 0.0
        %v2466 = vmax.f32 %v2370, 0.0
        %v2467 = vmax.f32 %v2371, 0.0
        %v2468 = vmax.f32 %v2372, 0.0
        %v2469 = vmax.f32 %v2373, 0.0
        %v2470 = vmax.f32 %v2374, 0.0
        %v2471 = vmul.f32 %v2087, %v2375
        %v2472 = vmul.f32 %v2088, %v2376
        %v2473 = vmul.f32 %v2089, %v2377
        %v2474 = vmul.f32 %v2090, %v2378
        %v2475 = vmul.f32 %v2091, %v2379
        %v2476 = vmul.f32 %v2092, %v2380
        %v2477 = vmul.f32 %v2093, %v2381
        %v2478 = vmul.f32 %v2094, %v2382
        %v2479 = vmul.f32 %v2095, %v2383
        %v2480 = vmul.f32 %v2096, %v2384
        %v2481 = vmul.f32 %v2097, %v2385
        %v2482 = vmul.f32 %v2098, %v2386
        %v2483 = vmul.f32 %v2099, %v2387
        %v2484 = vmul.f32 %v2100, %v2388
        %v2485 = vmul.f32 %v2101, %v2389
        %v2486 = vmul.f32 %v2102, %v2390
        %v2487 = vmul.f32 %v2103, %v2391
        %v2488 = vmul.f32 %v2104, %v2392
        %v2489 = vmul.f32 %v2105, %v2393
        %v2490 = vmul.f32 %v2106, %v2394
        %v2491 = vmul.f32 %v2107, %v2395
        %v2492 = vmul.f32 %v2108, %v2396
        %v2493 = vmul.f32 %v2109, %v2397
        %v2494 = vmul.f32 %v2110, %v2398
        %v2495 = vmul.f32 %v2111, %v2399
        %v2496 = vmul.f32 %v2112, %v2400
        %v2497 = vmul.f32 %v2113, %v2401
        %v2498 = vmul.f32 %v2114, %v2402
        %v2499 = vmul.f32 %v2115, %v2403
        %v2500 = vmul.f32 %v2116, %v2404
        %v2501 = vmul.f32 %v2117, %v2405
        %v2502 = vmul.f32 %v2118, %v2406
        %v2503 = vmul.f32 %v2119, %v2407
        %v2504 = vmul.f32 %v2120, %v2408
        %v2505 = vmul.f32 %v2121, %v2409
        %v2506 = vmul.f32 %v2122, %v2410
        %v2507 = vmul.f32 %v2123, %v2411
        %v2508 = vmul.f32 %v2124, %v2412
        %v2509 = vmul.f32 %v2125, %v2413
        %v2510 = vmul.f32 %v2126, %v2414
        %v2511 = vmul.f32 %v2127, %v2415
        %v2512 = vmul.f32 %v2128, %v2416
        %v2513 = vmul.f32 %v2129, %v2417
        %v2514 = vmul.f32 %v2130, %v2418
        %v2515 = vmul.f32 %v2131, %v2419
        %v2516 = vmul.f32 %v2132, %v2420
        %v2517 = vmul.f32 %v2133, %v2421
        %v2518 = vmul.f32 %v2134, %v2422
        %v2519 = vmul.f32 %v2135, %v2423
        %v2520 = vmul.f32 %v2136, %v2424
        %v2521 = vmul.f32 %v2137, %v2425
        %v2522 = vmul.f32 %v2138, %v2426
        %v2523 = vmul.f32 %v2139, %v2427
        %v2524 = vmul.f32 %v2140, %v2428
        %v2525 = vmul.f32 %v2141, %v2429
        %v2526 = vmul.f32 %v2142, %v2430
        %v2527 = vmul.f32 %v2143, %v2431
        %v2528 = vmul.f32 %v2144, %v2432
        %v2529 = vmul.f32 %v2145, %v2433
        %v2530 = vmul.f32 %v2146, %v2434
        %v2531 = vmul.f32 %v2147, %v2435
        %v2532 = vmul.f32 %v2148, %v2436
        %v2533 = vmul.f32 %v2149, %v2437
        %v2534 = vmul.f32 %v2150, %v2438
        %v2535 = vmul.f32 %v2151, %v2439
        %v2536 = vmul.f32 %v2152, %v2440
        %v2537 = vmul.f32 %v2153, %v2441
        %v2538 = vmul.f32 %v2154, %v2442
        %v2539 = vmul.f32 %v2155, %v2443
        %v2540 = vmul.f32 %v2156, %v2444
        %v2541 = vmul.f32 %v2157, %v2445
        %v2542 = vmul.f32 %v2158, %v2446
        %v2543 = vmul.f32 %v2159, %v2447
        %v2544 = vmul.f32 %v2160, %v2448
        %v2545 = vmul.f32 %v2161, %v2449
        %v2546 = vmul.f32 %v2162, %v2450
        %v2547 = vmul.f32 %v2163, %v2451
        %v2548 = vmul.f32 %v2164, %v2452
        %v2549 = vmul.f32 %v2165, %v2453
        %v2550 = vmul.f32 %v2166, %v2454
        %v2551 = vmul.f32 %v2167, %v2455
        %v2552 = vmul.f32 %v2168, %v2456
        %v2553 = vmul.f32 %v2169, %v2457
        %v2554 = vmul.f32 %v2170, %v2458
        %v2555 = vmul.f32 %v2171, %v2459
        %v2556 = vmul.f32 %v2172, %v2460
        %v2557 = vmul.f32 %v2173, %v2461
        %v2558 = vmul.f32 %v2174, %v2462
        %v2559 = vmul.f32 %v2175, %v2463
        %v2560 = vmul.f32 %v2176, %v2464
        %v2561 = vmul.f32 %v2177, %v2465
        %v2562 = vmul.f32 %v2178, %v2466
        %v2563 = vmul.f32 %v2179, %v2467
        %v2564 = vmul.f32 %v2180, %v2468
        %v2565 = vmul.f32 %v2181, %v2469
        %v2566 = vmul.f32 %v2182, %v2470
        %v2567 = vld [vmem:[%s1] sm:$0xff]
        %v2568 = vld [vmem:[%s1 + $0x8] sm:$0xf]
        %v2570 = vcombine.high %v2567, %v2567
        %2572 = vmatprep.subr.mxu0 %v2472
        %2573 = vmatpush1.msra.mxu0 %v2471
        %2574 = vmatprep.subr.mxu0 %v2474
        %2575 = vmatpush1.msra.mxu0 %v2473
        %2576 = vmatprep.subr.mxu0 %v2476
        %2577 = vmatpush1.msra.mxu0 %v2475
        %2578 = vmatprep.subr.mxu0 %v2478
        %2579 = vmatpush1.msra.mxu0 %v2477
        %2580 = vmatprep.subr.mxu0 %v2480
        %2581 = vmatpush1.msra.mxu0 %v2479
        %2582 = vmatprep.subr.mxu0 %v2482
        %2583 = vmatpush1.msra.mxu0 %v2481
        %2584 = vmatprep.subr.mxu0 %v2484
        %2585 = vmatpush1.msra.mxu0 %v2483
        %2586 = vmatprep.subr.mxu0 %v2486
        %2587 = vmatpush1.msra.mxu0 %v2485
        %2588 = vmatprep.subr.mxu0 %v2488
        %2589 = vmatpush1.msra.mxu0 %v2487
        %2590 = vmatprep.subr.mxu0 %v2490
        %2591 = vmatpush1.msra.mxu0 %v2489
        %2592 = vmatprep.subr.mxu0 %v2492
        %2593 = vmatpush1.msra.mxu0 %v2491
        %2594 = vmatprep.subr.mxu0 %v2494
        %2595 = vmatpush1.msra.mxu0 %v2493
        %2596 = vmatprep.subr.mxu0 %v2496
        %2597 = vmatpush1.msra.mxu0 %v2495
        %2598 = vmatprep.subr.mxu0 %v2498
        %2599 = vmatpush1.msra.mxu0 %v2497
        %2600 = vmatprep.subr.mxu0 %v2500
        %2601 = vmatpush1.msra.mxu0 %v2499
        %2602 = vmatprep.subr.mxu0 %v2502
        %2603 = vmatpush1.msra.mxu0 %v2501
        %2604 = vmatprep.subr.mxu0 %v2504
        %2605 = vmatpush1.msra.mxu0 %v2503
        %2606 = vmatprep.subr.mxu0 %v2506
        %2607 = vmatpush1.msra.mxu0 %v2505
        %2608 = vmatprep.subr.mxu0 %v2508
        %2609 = vmatpush1.msra.mxu0 %v2507
        %2610 = vmatprep.subr.mxu0 %v2510
        %2611 = vmatpush1.msra.mxu0 %v2509
        %2612 = vmatprep.subr.mxu0 %v2512
        %2613 = vmatpush1.msra.mxu0 %v2511
        %2614 = vmatprep.subr.mxu0 %v2514
        %2615 = vmatpush1.msra.mxu0 %v2513
        %2616 = vmatprep.subr.mxu0 %v2516
        %2617 = vmatpush1.msra.mxu0 %v2515
        %2618 = vmatprep.subr.mxu0 %v2518
        %2619 = vmatpush1.msra.mxu0 %v2517
        %2620 = vmatprep.subr.mxu0 %v2520
        %2621 = vmatpush1.msra.mxu0 %v2519
        %2622 = vmatprep.subr.mxu0 %v2522
        %2623 = vmatpush1.msra.mxu0 %v2521
        %2624 = vmatprep.subr.mxu0 %v2524
        %2625 = vmatpush1.msra.mxu0 %v2523
        %2626 = vmatprep.subr.mxu0 %v2526
        %2627 = vmatpush1.msra.mxu0 %v2525
        %2628 = vmatprep.subr.mxu0 %v2528
        %2629 = vmatpush1.msra.mxu0 %v2527
        %2630 = vmatprep.subr.mxu0 %v2530
        %2631 = vmatpush1.msra.mxu0 %v2529
        %2632 = vmatprep.subr.mxu0 %v2532
        %2633 = vmatpush1.msra.mxu0 %v2531
        %2634 = vmatprep.subr.mxu0 %v2534
        %2635 = vmatpush1.msra.mxu0 %v2533
        %2636 = vmatprep.mubr.f32.mxu0 %v2570
        %2637 = vmatmul.mubr.f32.gmra.mrb[0].mxu0 %v2567
        %v2638 = vpop.f32.mrb[0].mxu0
        %v2639 = vadd.f32 0.0, %v2638
        %v2640 = vpop.f32.mrb[0].mxu0
        %v2641 = vadd.f32 0.0, %v2640
        %2642 = vdwg.mxu0
        %2643 = vmatprep.subr.mxu0 %v2536
        %2644 = vmatpush1.msra.mxu0 %v2535
        %2645 = vmatprep.subr.mxu0 %v2538
        %2646 = vmatpush1.msra.mxu0 %v2537
        %2647 = vmatprep.subr.mxu0 %v2540
        %2648 = vmatpush1.msra.mxu0 %v2539
        %2649 = vmatprep.subr.mxu0 %v2542
        %2650 = vmatpush1.msra.mxu0 %v2541
        %2651 = vmatprep.subr.mxu0 %v2544
        %2652 = vmatpush1.msra.mxu0 %v2543
        %2653 = vmatprep.subr.mxu0 %v2546
        %2654 = vmatpush1.msra.mxu0 %v2545
        %2655 = vmatprep.subr.mxu0 %v2548
        %2656 = vmatpush1.msra.mxu0 %v2547
        %2657 = vmatprep.subr.mxu0 %v2550
        %2658 = vmatpush1.msra.mxu0 %v2549
        %2659 = vmatprep.subr.mxu0 %v2552
        %2660 = vmatpush1.msra.mxu0 %v2551
        %2661 = vmatprep.subr.mxu0 %v2554
        %2662 = vmatpush1.msra.mxu0 %v2553
        %2663 = vmatprep.subr.mxu0 %v2556
        %2664 = vmatpush1.msra.mxu0 %v2555
        %2665 = vmatprep.subr.mxu0 %v2558
        %2666 = vmatpush1.msra.mxu0 %v2557
        %2667 = vmatprep.subr.mxu0 %v2560
        %2668 = vmatpush1.msra.mxu0 %v2559
        %2669 = vmatprep.subr.mxu0 %v2562
        %2670 = vmatpush1.msra.mxu0 %v2561
        %2671 = vmatprep.subr.mxu0 %v2564
        %2672 = vmatpush1.msra.mxu0 %v2563
        %2673 = vmatprep.subr.mxu0 %v2566
        %2674 = vmatpush1.msra.mxu0 %v2565
        %2675 = vmatprep.subr.mxu0 0.0
        %2676 = vmatpush1.msra.mxu0 0.0
        %2677 = vmatprep.subr.mxu0 0.0
        %2678 = vmatpush1.msra.mxu0 0.0
        %2679 = vmatprep.subr.mxu0 0.0
        %2680 = vmatpush1.msra.mxu0 0.0
        %2681 = vmatprep.subr.mxu0 0.0
        %2682 = vmatpush1.msra.mxu0 0.0
        %2683 = vmatprep.subr.mxu0 0.0
        %2684 = vmatpush1.msra.mxu0 0.0
        %2685 = vmatprep.subr.mxu0 0.0
        %2686 = vmatpush1.msra.mxu0 0.0
        %2687 = vmatprep.subr.mxu0 0.0
        %2688 = vmatpush1.msra.mxu0 0.0
        %2689 = vmatprep.subr.mxu0 0.0
        %2690 = vmatpush1.msra.mxu0 0.0
        %2691 = vmatprep.subr.mxu0 0.0
        %2692 = vmatpush1.msra.mxu0 0.0
        %2693 = vmatprep.subr.mxu0 0.0
        %2694 = vmatpush1.msra.mxu0 0.0
        %2695 = vmatprep.subr.mxu0 0.0
        %2696 = vmatpush1.msra.mxu0 0.0
        %2697 = vmatprep.subr.mxu0 0.0
        %2698 = vmatpush1.msra.mxu0 0.0
        %2699 = vmatprep.subr.mxu0 0.0
        %2700 = vmatpush1.msra.mxu0 0.0
        %2701 = vmatprep.subr.mxu0 0.0
        %2702 = vmatpush1.msra.mxu0 0.0
        %2703 = vmatprep.subr.mxu0 0.0
        %2704 = vmatpush1.msra.mxu0 0.0
        %2705 = vmatprep.subr.mxu0 0.0
        %2706 = vmatpush1.msra.mxu0 0.0
        %2707 = vmatprep.mubr.f32.mxu0 0.0
        %2708 = vmatmul.mubr.f32.gmra.mrb[0].mxu0 %v2568
        %v2709 = vpop.f32.mrb[0].mxu0
        %v2710 = vadd.f32 %v2639, %v2709
        %v2711 = vpop.f32.mrb[0].mxu0
        %v2712 = vadd.f32 %v2641, %v2711
        %2713 = vdwg.mxu0
        %v2716 = vcombine.low %v2710, %v2712
        %2718 = vst [vmem:[%s319] sm:$0xff] %v2716
        %s2719 = smul.u32 2, %s24
        %p2720 = scmp.lt.s32.totalorder %s23, 1
        %s2721 = scalar_select %p2720, %s23, 1
        %p2722 = scmp.lt.s32.totalorder %s2719, 1
        %s2723 = scalar_select %p2722, %s2719, 1
        %s2724 = smul.addr %s2721, 2
        %s2725 = sadd.s32 %s2723, %s2724
        %s2726 = smul.addr %s2725, 4
        %s2727 = scalar_lea.vmem %s6, %s2726
        // Predicated region
        $region53: #{neural_texture_forward.1} parent=43 // pred_check
          %p2728 = pneg %p184
        $region54: #{neural_texture_forward.1} parent=43 // pred_check_branch
          %2730 = sbr.rel (%p2728) target = $region56
        $region55: #{neural_texture_forward.1} parent=43 // pred_region
          %s2731 = smul.u32 2, %s24
        $region56: #{neural_texture_forward.1} parent=43 // pred_fallthru
          _
      $region44: #{neural_texture_forward.1} parent=5 // pred_fallthru
        _
      %p2732 = scmp.le.s32.totalorder 2, %s14
      // Predicated region
      $region57: #{neural_texture_forward.1} parent=5 // pred_check
        %p2733 = pneg %p2732
      $region58: #{neural_texture_forward.1} parent=5 // pred_check_branch
        %2735 = sbr.rel (%p2733) target = $region60
      $region59: #{neural_texture_forward.1} parent=5 // pred_region
        %s2736 = ssub.s32 %s14, 2
        // Predicated region
        $region61: #{neural_texture_forward.1} parent=59 // pred_check
          %p2737 = pneg %p190
        $region62: #{neural_texture_forward.1} parent=59 // pred_check_branch
          %2739 = sbr.rel (%p2737) target = $region64
        $region63: #{neural_texture_forward.1} parent=59 // pred_region
          %s2740 = smul.u32 2, %s26
          %p2741 = scmp.lt.s32.totalorder %s25, 1
          %s2742 = scalar_select %p2741, %s25, 1
          %p2743 = scmp.lt.s32.totalorder %s2740, 1
          %s2744 = scalar_select %p2743, %s2740, 1
          %s2745 = smul.addr %s2742, 2
          %s2746 = sadd.s32 %s2744, %s2745
          %s2747 = smul.addr %s2746, 4
          %s2748 = scalar_lea.vmem %s6, %s2747
        $region64: #{neural_texture_forward.1} parent=59 // pred_fallthru
          _
      $region60: #{neural_texture_forward.1} parent=5 // pred_fallthru
        _
    $region6: #{neural_texture_forward.1} parent=1 // loop_footer
      %s18 = sadd.s32 1, %s14
    $region7: #{neural_texture_forward.1} parent=1 // loop_footer_branch
      %13 = sbr.rel target = $region3
    $region8: #{neural_texture_forward.1} parent=1 // loop_exit
      _
    %2749 = vsyncpa [#allocation3], 1
    %s2750 = scalar_lea.sflag [#allocation3], 1
    %2751 = vsyncpa %s2750, 1
    %2752 = vsyncpa [#allocation5], 1

</llo_original>
